<compile_context>
chip_gen: v5e
topology: v5e:2x2
jax: 0.10.0
libtpu: 0.0.40
codegen_flags: <defaults>
</compile_context>

<pallas_src>
import jax
import jax.numpy as jnp
from jax.experimental import pallas as pl
from jax.experimental.pallas import tpu as pltpu

INPUT_SIZE = 28
SEQ_LEN = 28          # fixed: the module's forward loops over range(28)
HIDDEN = 128
NUM_CLASSES = 10
PADDED_CLASSES = 128  # lane-dense output; sliced back to 10 in the wrapper


def _round_up(n, m):
    return ((n + m - 1) // m) * m


def _choose_tile_b(B):
    tb = min(256, _round_up(max(B, 1), 8))
    # Prefer >= 2 grid steps so v7x's two TensorCores both get work on the
    # "parallel" batch axis (the 28-step recurrence is serial per tile).
    if B >= 16 and _round_up(B, tb) // tb < 2:
        tb = _round_up((B + 1) // 2, 8)
    return tb


def rnn5_kernel(xp_ref, whh_ref, wout_ref, bout_ref, out_ref, hs_ref):
    # xp_ref  : (T, TILE_B, H)   f32   precomputed x_t @ W_ih^T + (b_ih+b_hh)
    # whh_ref : (H, H)           bf16  W_hh^T
    # wout_ref: (T*H, CP)        bf16  Out2Class weight^T, classes padded to 128
    # bout_ref: (1, CP)          f32   Out2Class bias, lane-padded
    # out_ref : (TILE_B, CP)     f32   lane-dense output block
    # hs_ref  : (TILE_B, T*H)    bf16  VMEM scratch: concatenated hidden states
    T, tile_b, H = xp_ref.shape
    CP = out_ref.shape[1]

    whh = whh_ref[...]                                    # (H, H) bf16, resident

    # ---- Serial recurrence: h_t = tanh(xp[t] + h_{t-1} @ W_hh).
    # Fully unrolled (T = 28 compile-time); every slice index is static.
    # Only ONE (TILE_B,128)@(128,128) matmul + one tanh per step sits on the
    # dependency chain; the output head is deferred.
    h_b = None
    for t in range(T):
        pre = xp_ref[t]                                   # (TILE_B, H) f32
        if t > 0:                                         # h_0 == 0
            pre = pre + jnp.dot(h_b, whh, preferred_element_type=jnp.float32)
        h_b = jnp.tanh(pre).astype(jnp.bfloat16)          # single cast per step
        hs_ref[:, t * H:(t + 1) * H] = h_b                # lane offset t*128

    # ---- Deferred output head: one streamed (TILE_B, T*H) @ (T*H, CP) matmul,
    # f32 accumulation, written straight to the lane-dense output block.
    out_ref[...] = (jnp.broadcast_to(bout_ref[...], (tile_b, CP))
                    + jnp.dot(hs_ref[...], wout_ref[...],
                              preferred_element_type=jnp.float32))


def rnn5_forward(x, params, tile_b=None):
    """x: (B, 28, 28) float32 -> (B, 10) float32 (RNN5.forward semantics)."""
    B, T, F = x.shape
    assert T == SEQ_LEN and F == INPUT_SIZE

    if tile_b is None:
        tile_b = _choose_tile_b(B)
    Bp = _round_up(B, tile_b)

    x_f = x.astype(jnp.float32)

    # Input projection + combined RNN bias hoisted to XLA (off the serial
    # recurrence), produced time-major so the kernel's xp block is lane-dense.
    bias = (params["b_ih"] + params["b_hh"]).astype(jnp.float32)      # (128,)
    xp = jnp.einsum("btf,hf->tbh", x_f,
                    params["w_ih"].astype(jnp.float32)) + bias        # (T,B,128)
    if Bp != B:
        xp = jnp.pad(xp, ((0, 0), (0, Bp - B), (0, 0)))

    # Weight prep (one-time): bf16 MXU operands, lane-padded head.
    whh_t = params["w_hh"].T.astype(jnp.bfloat16)                     # (128,128)
    # Concat in forward is timestep-major (col = t*128 + h), so W_out^T is
    # already in the right row order; pad classes 10 -> 128 lanes.
    wout = jnp.pad(params["w_out"].T,
                   ((0, 0), (0, PADDED_CLASSES - NUM_CLASSES)))       # (3584,128)
    wout = wout.astype(jnp.bfloat16)
    bout = jnp.pad(params["b_out"], (0, PADDED_CLASSES - NUM_CLASSES))
    bout = bout.reshape(1, PADDED_CLASSES).astype(jnp.float32)

    grid = (Bp // tile_b,)
    out_padded = pl.pallas_call(
        rnn5_kernel,
        out_shape=jax.ShapeDtypeStruct((Bp, PADDED_CLASSES), jnp.float32),
        grid_spec=pltpu.PrefetchScalarGridSpec(
            num_scalar_prefetch=0,
            grid=grid,
            in_specs=[
                pl.BlockSpec((SEQ_LEN, tile_b, HIDDEN), lambda i: (0, i, 0)),
                pl.BlockSpec((HIDDEN, HIDDEN), lambda i: (0, 0)),
                pl.BlockSpec((SEQ_LEN * HIDDEN, PADDED_CLASSES),
                             lambda i: (0, 0)),
                pl.BlockSpec((1, PADDED_CLASSES), lambda i: (0, 0)),
            ],
            out_specs=pl.BlockSpec((tile_b, PADDED_CLASSES), lambda i: (i, 0)),
            scratch_shapes=[
                pltpu.VMEM((tile_b, SEQ_LEN * HIDDEN), jnp.bfloat16),  # h_concat
            ],
        ),
        compiler_params=pltpu.CompilerParams(
            dimension_semantics=("parallel",),
            vmem_limit_bytes=32 * 1024 * 1024,
        ),
    )(xp, whh_t, wout, bout)

    return out_padded[:B, :NUM_CLASSES]


def init_params(key):
    # Deterministic init mimicking PyTorch defaults: U(-1/sqrt(fan_in_ish), +).
    k_rnn = 1.0 / jnp.sqrt(jnp.float32(HIDDEN))
    k_lin = 1.0 / jnp.sqrt(jnp.float32(HIDDEN * SEQ_LEN))
    ks = jax.random.split(key, 6)
    u = lambda kk, shape, k: jax.random.uniform(kk, shape, jnp.float32, -k, k)
    return {
        "w_ih": u(ks[0], (HIDDEN, INPUT_SIZE), k_rnn),
        "w_hh": u(ks[1], (HIDDEN, HIDDEN), k_rnn),
        "b_ih": u(ks[2], (HIDDEN,), k_rnn),
        "b_hh": u(ks[3], (HIDDEN,), k_rnn),
        "w_out": u(ks[4], (NUM_CLASSES, HIDDEN * SEQ_LEN), k_lin),
        "b_out": u(ks[5], (NUM_CLASSES,), k_lin),
    }


def ref_forward(x, p):
    # Pure-JAX f32 reference with RNN5 semantics: concat ALL hidden states,
    # then Linear(3584 -> 10).
    B = x.shape[0]
    h = jnp.zeros((B, HIDDEN), jnp.float32)
    hs = []
    for t in range(SEQ_LEN):
        h = jnp.tanh(x[:, t, :] @ p["w_ih"].T + p["b_ih"]
                     + h @ p["w_hh"].T + p["b_hh"])
        hs.append(h)
    hcat = jnp.concatenate(hs, axis=1)            # (B, 28*128), timestep-major
    return hcat @ p["w_out"].T + p["b_out"]


if __name__ == "__main__":
    key = jax.random.PRNGKey(0)
    k_x, k_p = jax.random.split(key)

    B = 2
    x = jax.random.normal(k_x, (B, SEQ_LEN, INPUT_SIZE), jnp.float32)
    params = init_params(k_p)

    out = jax.block_until_ready(rnn5_forward(x, params))
    ref = jax.block_until_ready(ref_forward(x, params))

    assert out.shape == (B, NUM_CLASSES)
    assert jnp.allclose(out, ref, rtol=5e-2, atol=5e-2), "mismatch vs JAX reference"

    print("KERNEL_OK")
</pallas_src>

<mosaic_0001>
module attributes {stable_mosaic.version = 11 : i64} {
  func.func @rnn5_kernel(%arg0: i32, %arg1: memref<28x8x128xf32, #tpu.memory_space<vmem>>, %arg2: memref<128x128xbf16, #tpu.memory_space<vmem>>, %arg3: memref<3584x128xbf16, #tpu.memory_space<vmem>>, %arg4: memref<1x128xf32, #tpu.memory_space<vmem>>, %arg5: memref<8x128xf32, #tpu.memory_space<vmem>>, %arg6: memref<8x3584xbf16, #tpu.memory_space<vmem>>) attributes {dimension_semantics = [#tpu.dimension_semantics<parallel>], iteration_bounds = array<i64: 1>, scalar_prefetch = 0 : i64, scratch_operands = 1 : i64, tpu.core_type = #tpu.core_type<tc>, window_params = [{transform_indices = @transform_0, window_bounds = array<i64: 28, 8, 128>}, {pipeline_mode = #tpu.pipeline_mode<synchronous>, transform_indices = @transform_1, window_bounds = array<i64: 128, 128>}, {pipeline_mode = #tpu.pipeline_mode<synchronous>, transform_indices = @transform_2, window_bounds = array<i64: 3584, 128>}, {pipeline_mode = #tpu.pipeline_mode<synchronous>, transform_indices = @transform_3, window_bounds = array<i64: 1, 128>}, {transform_indices = @transform_4, window_bounds = array<i64: 8, 128>}]} {
    %c0 = arith.constant 0 : index
    %c0_0 = arith.constant 0 : index
    %0 = vector.load %arg2[%c0, %c0_0] : memref<128x128xbf16, #tpu.memory_space<vmem>>, vector<128x128xbf16>
    %c0_1 = arith.constant 0 : index
    %c0_2 = arith.constant 0 : index
    %c0_3 = arith.constant 0 : index
    %1 = vector.load %arg1[%c0_1, %c0_2, %c0_3] : memref<28x8x128xf32, #tpu.memory_space<vmem>>, vector<1x8x128xf32>
    %2 = vector.shape_cast %1 : vector<1x8x128xf32> to vector<8x128xf32>
    %3 = math.tanh %2 : vector<8x128xf32>
    %4 = arith.truncf %3 : vector<8x128xf32> to vector<8x128xbf16>
    %c0_4 = arith.constant 0 : index
    %c0_5 = arith.constant 0 : index
    %5 = vector.load %arg6[%c0_4, %c0_5] : memref<8x3584xbf16, #tpu.memory_space<vmem>>, vector<8x128xbf16>
    tpu.vector_store %arg6[%c0_4, %c0_5], %4 {strides = array<i32>} : memref<8x3584xbf16, #tpu.memory_space<vmem>>, vector<8x128xbf16>,
    %c1 = arith.constant 1 : index
    %c0_6 = arith.constant 0 : index
    %c0_7 = arith.constant 0 : index
    %6 = vector.load %arg1[%c1, %c0_6, %c0_7] : memref<28x8x128xf32, #tpu.memory_space<vmem>>, vector<1x8x128xf32>
    %7 = vector.shape_cast %6 : vector<1x8x128xf32> to vector<8x128xf32>
    %cst = arith.constant dense<0.000000e+00> : vector<8x128xf32>
    %8 = tpu.matmul %4, %0, %cst {dimension_numbers = #tpu.dot_dimension_numbers<[1], [0], [0], [1], [0, 0, 1, 1], [], []>} : vector<8x128xbf16>, vector<128x128xbf16>, vector<8x128xf32> -> vector<8x128xf32>
    %9 = arith.addf %7, %8 : vector<8x128xf32>
    %10 = math.tanh %9 : vector<8x128xf32>
    %11 = arith.truncf %10 : vector<8x128xf32> to vector<8x128xbf16>
    %c0_8 = arith.constant 0 : index
    %c128 = arith.constant 128 : index
    %12 = vector.load %arg6[%c0_8, %c128] : memref<8x3584xbf16, #tpu.memory_space<vmem>>, vector<8x128xbf16>
    tpu.vector_store %arg6[%c0_8, %c128], %11 {strides = array<i32>} : memref<8x3584xbf16, #tpu.memory_space<vmem>>, vector<8x128xbf16>,
    %c2 = arith.constant 2 : index
    %c0_9 = arith.constant 0 : index
    %c0_10 = arith.constant 0 : index
    %13 = vector.load %arg1[%c2, %c0_9, %c0_10] : memref<28x8x128xf32, #tpu.memory_space<vmem>>, vector<1x8x128xf32>
    %14 = vector.shape_cast %13 : vector<1x8x128xf32> to vector<8x128xf32>
    %cst_11 = arith.constant dense<0.000000e+00> : vector<8x128xf32>
    %15 = tpu.matmul %11, %0, %cst_11 {dimension_numbers = #tpu.dot_dimension_numbers<[1], [0], [0], [1], [0, 0, 1, 1], [], []>} : vector<8x128xbf16>, vector<128x128xbf16>, vector<8x128xf32> -> vector<8x128xf32>
    %16 = arith.addf %14, %15 : vector<8x128xf32>
    %17 = math.tanh %16 : vector<8x128xf32>
    %18 = arith.truncf %17 : vector<8x128xf32> to vector<8x128xbf16>
    %c0_12 = arith.constant 0 : index
    %c256 = arith.constant 256 : index
    %19 = vector.load %arg6[%c0_12, %c256] : memref<8x3584xbf16, #tpu.memory_space<vmem>>, vector<8x128xbf16>
    tpu.vector_store %arg6[%c0_12, %c256], %18 {strides = array<i32>} : memref<8x3584xbf16, #tpu.memory_space<vmem>>, vector<8x128xbf16>,
    %c3 = arith.constant 3 : index
    %c0_13 = arith.constant 0 : index
    %c0_14 = arith.constant 0 : index
    %20 = vector.load %arg1[%c3, %c0_13, %c0_14] : memref<28x8x128xf32, #tpu.memory_space<vmem>>, vector<1x8x128xf32>
    %21 = vector.shape_cast %20 : vector<1x8x128xf32> to vector<8x128xf32>
    %cst_15 = arith.constant dense<0.000000e+00> : vector<8x128xf32>
    %22 = tpu.matmul %18, %0, %cst_15 {dimension_numbers = #tpu.dot_dimension_numbers<[1], [0], [0], [1], [0, 0, 1, 1], [], []>} : vector<8x128xbf16>, vector<128x128xbf16>, vector<8x128xf32> -> vector<8x128xf32>
    %23 = arith.addf %21, %22 : vector<8x128xf32>
    %24 = math.tanh %23 : vector<8x128xf32>
    %25 = arith.truncf %24 : vector<8x128xf32> to vector<8x128xbf16>
    %c0_16 = arith.constant 0 : index
    %c384 = arith.constant 384 : index
    %26 = vector.load %arg6[%c0_16, %c384] : memref<8x3584xbf16, #tpu.memory_space<vmem>>, vector<8x128xbf16>
    tpu.vector_store %arg6[%c0_16, %c384], %25 {strides = array<i32>} : memref<8x3584xbf16, #tpu.memory_space<vmem>>, vector<8x128xbf16>,
    %c4 = arith.constant 4 : index
    %c0_17 = arith.constant 0 : index
    %c0_18 = arith.constant 0 : index
    %27 = vector.load %arg1[%c4, %c0_17, %c0_18] : memref<28x8x128xf32, #tpu.memory_space<vmem>>, vector<1x8x128xf32>
    %28 = vector.shape_cast %27 : vector<1x8x128xf32> to vector<8x128xf32>
    %cst_19 = arith.constant dense<0.000000e+00> : vector<8x128xf32>
    %29 = tpu.matmul %25, %0, %cst_19 {dimension_numbers = #tpu.dot_dimension_numbers<[1], [0], [0], [1], [0, 0, 1, 1], [], []>} : vector<8x128xbf16>, vector<128x128xbf16>, vector<8x128xf32> -> vector<8x128xf32>
    %30 = arith.addf %28, %29 : vector<8x128xf32>
    %31 = math.tanh %30 : vector<8x128xf32>
    %32 = arith.truncf %31 : vector<8x128xf32> to vector<8x128xbf16>
    %c0_20 = arith.constant 0 : index
    %c512 = arith.constant 512 : index
    %33 = vector.load %arg6[%c0_20, %c512] : memref<8x3584xbf16, #tpu.memory_space<vmem>>, vector<8x128xbf16>
    tpu.vector_store %arg6[%c0_20, %c512], %32 {strides = array<i32>} : memref<8x3584xbf16, #tpu.memory_space<vmem>>, vector<8x128xbf16>,
    %c5 = arith.constant 5 : index
    %c0_21 = arith.constant 0 : index
    %c0_22 = arith.constant 0 : index
    %34 = vector.load %arg1[%c5, %c0_21, %c0_22] : memref<28x8x128xf32, #tpu.memory_space<vmem>>, vector<1x8x128xf32>
    %35 = vector.shape_cast %34 : vector<1x8x128xf32> to vector<8x128xf32>
    %cst_23 = arith.constant dense<0.000000e+00> : vector<8x128xf32>
    %36 = tpu.matmul %32, %0, %cst_23 {dimension_numbers = #tpu.dot_dimension_numbers<[1], [0], [0], [1], [0, 0, 1, 1], [], []>} : vector<8x128xbf16>, vector<128x128xbf16>, vector<8x128xf32> -> vector<8x128xf32>
    %37 = arith.addf %35, %36 : vector<8x128xf32>
    %38 = math.tanh %37 : vector<8x128xf32>
    %39 = arith.truncf %38 : vector<8x128xf32> to vector<8x128xbf16>
    %c0_24 = arith.constant 0 : index
    %c640 = arith.constant 640 : index
    %40 = vector.load %arg6[%c0_24, %c640] : memref<8x3584xbf16, #tpu.memory_space<vmem>>, vector<8x128xbf16>
    tpu.vector_store %arg6[%c0_24, %c640], %39 {strides = array<i32>} : memref<8x3584xbf16, #tpu.memory_space<vmem>>, vector<8x128xbf16>,
    %c6 = arith.constant 6 : index
    %c0_25 = arith.constant 0 : index
    %c0_26 = arith.constant 0 : index
    %41 = vector.load %arg1[%c6, %c0_25, %c0_26] : memref<28x8x128xf32, #tpu.memory_space<vmem>>, vector<1x8x128xf32>
    %42 = vector.shape_cast %41 : vector<1x8x128xf32> to vector<8x128xf32>
    %cst_27 = arith.constant dense<0.000000e+00> : vector<8x128xf32>
    %43 = tpu.matmul %39, %0, %cst_27 {dimension_numbers = #tpu.dot_dimension_numbers<[1], [0], [0], [1], [0, 0, 1, 1], [], []>} : vector<8x128xbf16>, vector<128x128xbf16>, vector<8x128xf32> -> vector<8x128xf32>
    %44 = arith.addf %42, %43 : vector<8x128xf32>
    %45 = math.tanh %44 : vector<8x128xf32>
    %46 = arith.truncf %45 : vector<8x128xf32> to vector<8x128xbf16>
    %c0_28 = arith.constant 0 : index
    %c768 = arith.constant 768 : index
    %47 = vector.load %arg6[%c0_28, %c768] : memref<8x3584xbf16, #tpu.memory_space<vmem>>, vector<8x128xbf16>
    tpu.vector_store %arg6[%c0_28, %c768], %46 {strides = array<i32>} : memref<8x3584xbf16, #tpu.memory_space<vmem>>, vector<8x128xbf16>,
    %c7 = arith.constant 7 : index
    %c0_29 = arith.constant 0 : index
    %c0_30 = arith.constant 0 : index
    %48 = vector.load %arg1[%c7, %c0_29, %c0_30] : memref<28x8x128xf32, #tpu.memory_space<vmem>>, vector<1x8x128xf32>
    %49 = vector.shape_cast %48 : vector<1x8x128xf32> to vector<8x128xf32>
    %cst_31 = arith.constant dense<0.000000e+00> : vector<8x128xf32>
    %50 = tpu.matmul %46, %0, %cst_31 {dimension_numbers = #tpu.dot_dimension_numbers<[1], [0], [0], [1], [0, 0, 1, 1], [], []>} : vector<8x128xbf16>, vector<128x128xbf16>, vector<8x128xf32> -> vector<8x128xf32>
    %51 = arith.addf %49, %50 : vector<8x128xf32>
    %52 = math.tanh %51 : vector<8x128xf32>
    %53 = arith.truncf %52 : vector<8x128xf32> to vector<8x128xbf16>
    %c0_32 = arith.constant 0 : index
    %c896 = arith.constant 896 : index
    %54 = vector.load %arg6[%c0_32, %c896] : memref<8x3584xbf16, #tpu.memory_space<vmem>>, vector<8x128xbf16>
    tpu.vector_store %arg6[%c0_32, %c896], %53 {strides = array<i32>} : memref<8x3584xbf16, #tpu.memory_space<vmem>>, vector<8x128xbf16>,
    %c8 = arith.constant 8 : index
    %c0_33 = arith.constant 0 : index
    %c0_34 = arith.constant 0 : index
    %55 = vector.load %arg1[%c8, %c0_33, %c0_34] : memref<28x8x128xf32, #tpu.memory_space<vmem>>, vector<1x8x128xf32>
    %56 = vector.shape_cast %55 : vector<1x8x128xf32> to vector<8x128xf32>
    %cst_35 = arith.constant dense<0.000000e+00> : vector<8x128xf32>
    %57 = tpu.matmul %53, %0, %cst_35 {dimension_numbers = #tpu.dot_dimension_numbers<[1], [0], [0], [1], [0, 0, 1, 1], [], []>} : vector<8x128xbf16>, vector<128x128xbf16>, vector<8x128xf32> -> vector<8x128xf32>
    %58 = arith.addf %56, %57 : vector<8x128xf32>
    %59 = math.tanh %58 : vector<8x128xf32>
    %60 = arith.truncf %59 : vector<8x128xf32> to vector<8x128xbf16>
    %c0_36 = arith.constant 0 : index
    %c1024 = arith.constant 1024 : index
    %61 = vector.load %arg6[%c0_36, %c1024] : memref<8x3584xbf16, #tpu.memory_space<vmem>>, vector<8x128xbf16>
    tpu.vector_store %arg6[%c0_36, %c1024], %60 {strides = array<i32>} : memref<8x3584xbf16, #tpu.memory_space<vmem>>, vector<8x128xbf16>,
    %c9 = arith.constant 9 : index
    %c0_37 = arith.constant 0 : index
    %c0_38 = arith.constant 0 : index
    %62 = vector.load %arg1[%c9, %c0_37, %c0_38] : memref<28x8x128xf32, #tpu.memory_space<vmem>>, vector<1x8x128xf32>
    %63 = vector.shape_cast %62 : vector<1x8x128xf32> to vector<8x128xf32>
    %cst_39 = arith.constant dense<0.000000e+00> : vector<8x128xf32>
    %64 = tpu.matmul %60, %0, %cst_39 {dimension_numbers = #tpu.dot_dimension_numbers<[1], [0], [0], [1], [0, 0, 1, 1], [], []>} : vector<8x128xbf16>, vector<128x128xbf16>, vector<8x128xf32> -> vector<8x128xf32>
    %65 = arith.addf %63, %64 : vector<8x128xf32>
    %66 = math.tanh %65 : vector<8x128xf32>
    %67 = arith.truncf %66 : vector<8x128xf32> to vector<8x128xbf16>
    %c0_40 = arith.constant 0 : index
    %c1152 = arith.constant 1152 : index
    %68 = vector.load %arg6[%c0_40, %c1152] : memref<8x3584xbf16, #tpu.memory_space<vmem>>, vector<8x128xbf16>
    tpu.vector_store %arg6[%c0_40, %c1152], %67 {strides = array<i32>} : memref<8x3584xbf16, #tpu.memory_space<vmem>>, vector<8x128xbf16>,
    %c10 = arith.constant 10 : index
    %c0_41 = arith.constant 0 : index
    %c0_42 = arith.constant 0 : index
    %69 = vector.load %arg1[%c10, %c0_41, %c0_42] : memref<28x8x128xf32, #tpu.memory_space<vmem>>, vector<1x8x128xf32>
    %70 = vector.shape_cast %69 : vector<1x8x128xf32> to vector<8x128xf32>
    %cst_43 = arith.constant dense<0.000000e+00> : vector<8x128xf32>
    %71 = tpu.matmul %67, %0, %cst_43 {dimension_numbers = #tpu.dot_dimension_numbers<[1], [0], [0], [1], [0, 0, 1, 1], [], []>} : vector<8x128xbf16>, vector<128x128xbf16>, vector<8x128xf32> -> vector<8x128xf32>
    %72 = arith.addf %70, %71 : vector<8x128xf32>
    %73 = math.tanh %72 : vector<8x128xf32>
    %74 = arith.truncf %73 : vector<8x128xf32> to vector<8x128xbf16>
    %c0_44 = arith.constant 0 : index
    %c1280 = arith.constant 1280 : index
    %75 = vector.load %arg6[%c0_44, %c1280] : memref<8x3584xbf16, #tpu.memory_space<vmem>>, vector<8x128xbf16>
    tpu.vector_store %arg6[%c0_44, %c1280], %74 {strides = array<i32>} : memref<8x3584xbf16, #tpu.memory_space<vmem>>, vector<8x128xbf16>,
    %c11 = arith.constant 11 : index
    %c0_45 = arith.constant 0 : index
    %c0_46 = arith.constant 0 : index
    %76 = vector.load %arg1[%c11, %c0_45, %c0_46] : memref<28x8x128xf32, #tpu.memory_space<vmem>>, vector<1x8x128xf32>
    %77 = vector.shape_cast %76 : vector<1x8x128xf32> to vector<8x128xf32>
    %cst_47 = arith.constant dense<0.000000e+00> : vector<8x128xf32>
    %78 = tpu.matmul %74, %0, %cst_47 {dimension_numbers = #tpu.dot_dimension_numbers<[1], [0], [0], [1], [0, 0, 1, 1], [], []>} : vector<8x128xbf16>, vector<128x128xbf16>, vector<8x128xf32> -> vector<8x128xf32>
    %79 = arith.addf %77, %78 : vector<8x128xf32>
    %80 = math.tanh %79 : vector<8x128xf32>
    %81 = arith.truncf %80 : vector<8x128xf32> to vector<8x128xbf16>
    %c0_48 = arith.constant 0 : index
    %c1408 = arith.constant 1408 : index
    %82 = vector.load %arg6[%c0_48, %c1408] : memref<8x3584xbf16, #tpu.memory_space<vmem>>, vector<8x128xbf16>
    tpu.vector_store %arg6[%c0_48, %c1408], %81 {strides = array<i32>} : memref<8x3584xbf16, #tpu.memory_space<vmem>>, vector<8x128xbf16>,
    %c12 = arith.constant 12 : index
    %c0_49 = arith.constant 0 : index
    %c0_50 = arith.constant 0 : index
    %83 = vector.load %arg1[%c12, %c0_49, %c0_50] : memref<28x8x128xf32, #tpu.memory_space<vmem>>, vector<1x8x128xf32>
    %84 = vector.shape_cast %83 : vector<1x8x128xf32> to vector<8x128xf32>
    %cst_51 = arith.constant dense<0.000000e+00> : vector<8x128xf32>
    %85 = tpu.matmul %81, %0, %cst_51 {dimension_numbers = #tpu.dot_dimension_numbers<[1], [0], [0], [1], [0, 0, 1, 1], [], []>} : vector<8x128xbf16>, vector<128x128xbf16>, vector<8x128xf32> -> vector<8x128xf32>
    %86 = arith.addf %84, %85 : vector<8x128xf32>
    %87 = math.tanh %86 : vector<8x128xf32>
    %88 = arith.truncf %87 : vector<8x128xf32> to vector<8x128xbf16>
    %c0_52 = arith.constant 0 : index
    %c1536 = arith.constant 1536 : index
    %89 = vector.load %arg6[%c0_52, %c1536] : memref<8x3584xbf16, #tpu.memory_space<vmem>>, vector<8x128xbf16>
    tpu.vector_store %arg6[%c0_52, %c1536], %88 {strides = array<i32>} : memref<8x3584xbf16, #tpu.memory_space<vmem>>, vector<8x128xbf16>,
    %c13 = arith.constant 13 : index
    %c0_53 = arith.constant 0 : index
    %c0_54 = arith.constant 0 : index
    %90 = vector.load %arg1[%c13, %c0_53, %c0_54] : memref<28x8x128xf32, #tpu.memory_space<vmem>>, vector<1x8x128xf32>
    %91 = vector.shape_cast %90 : vector<1x8x128xf32> to vector<8x128xf32>
    %cst_55 = arith.constant dense<0.000000e+00> : vector<8x128xf32>
    %92 = tpu.matmul %88, %0, %cst_55 {dimension_numbers = #tpu.dot_dimension_numbers<[1], [0], [0], [1], [0, 0, 1, 1], [], []>} : vector<8x128xbf16>, vector<128x128xbf16>, vector<8x128xf32> -> vector<8x128xf32>
    %93 = arith.addf %91, %92 : vector<8x128xf32>
    %94 = math.tanh %93 : vector<8x128xf32>
    %95 = arith.truncf %94 : vector<8x128xf32> to vector<8x128xbf16>
    %c0_56 = arith.constant 0 : index
    %c1664 = arith.constant 1664 : index
    %96 = vector.load %arg6[%c0_56, %c1664] : memref<8x3584xbf16, #tpu.memory_space<vmem>>, vector<8x128xbf16>
    tpu.vector_store %arg6[%c0_56, %c1664], %95 {strides = array<i32>} : memref<8x3584xbf16, #tpu.memory_space<vmem>>, vector<8x128xbf16>,
    %c14 = arith.constant 14 : index
    %c0_57 = arith.constant 0 : index
    %c0_58 = arith.constant 0 : index
    %97 = vector.load %arg1[%c14, %c0_57, %c0_58] : memref<28x8x128xf32, #tpu.memory_space<vmem>>, vector<1x8x128xf32>
    %98 = vector.shape_cast %97 : vector<1x8x128xf32> to vector<8x128xf32>
    %cst_59 = arith.constant dense<0.000000e+00> : vector<8x128xf32>
    %99 = tpu.matmul %95, %0, %cst_59 {dimension_numbers = #tpu.dot_dimension_numbers<[1], [0], [0], [1], [0, 0, 1, 1], [], []>} : vector<8x128xbf16>, vector<128x128xbf16>, vector<8x128xf32> -> vector<8x128xf32>
    %100 = arith.addf %98, %99 : vector<8x128xf32>
    %101 = math.tanh %100 : vector<8x128xf32>
    %102 = arith.truncf %101 : vector<8x128xf32> to vector<8x128xbf16>
    %c0_60 = arith.constant 0 : index
    %c1792 = arith.constant 1792 : index
    %103 = vector.load %arg6[%c0_60, %c1792] : memref<8x3584xbf16, #tpu.memory_space<vmem>>, vector<8x128xbf16>
    tpu.vector_store %arg6[%c0_60, %c1792], %102 {strides = array<i32>} : memref<8x3584xbf16, #tpu.memory_space<vmem>>, vector<8x128xbf16>,
    %c15 = arith.constant 15 : index
    %c0_61 = arith.constant 0 : index
    %c0_62 = arith.constant 0 : index
    %104 = vector.load %arg1[%c15, %c0_61, %c0_62] : memref<28x8x128xf32, #tpu.memory_space<vmem>>, vector<1x8x128xf32>
    %105 = vector.shape_cast %104 : vector<1x8x128xf32> to vector<8x128xf32>
    %cst_63 = arith.constant dense<0.000000e+00> : vector<8x128xf32>
    %106 = tpu.matmul %102, %0, %cst_63 {dimension_numbers = #tpu.dot_dimension_numbers<[1], [0], [0], [1], [0, 0, 1, 1], [], []>} : vector<8x128xbf16>, vector<128x128xbf16>, vector<8x128xf32> -> vector<8x128xf32>
    %107 = arith.addf %105, %106 : vector<8x128xf32>
    %108 = math.tanh %107 : vector<8x128xf32>
    %109 = arith.truncf %108 : vector<8x128xf32> to vector<8x128xbf16>
    %c0_64 = arith.constant 0 : index
    %c1920 = arith.constant 1920 : index
    %110 = vector.load %arg6[%c0_64, %c1920] : memref<8x3584xbf16, #tpu.memory_space<vmem>>, vector<8x128xbf16>
    tpu.vector_store %arg6[%c0_64, %c1920], %109 {strides = array<i32>} : memref<8x3584xbf16, #tpu.memory_space<vmem>>, vector<8x128xbf16>,
    %c16 = arith.constant 16 : index
    %c0_65 = arith.constant 0 : index
    %c0_66 = arith.constant 0 : index
    %111 = vector.load %arg1[%c16, %c0_65, %c0_66] : memref<28x8x128xf32, #tpu.memory_space<vmem>>, vector<1x8x128xf32>
    %112 = vector.shape_cast %111 : vector<1x8x128xf32> to vector<8x128xf32>
    %cst_67 = arith.constant dense<0.000000e+00> : vector<8x128xf32>
    %113 = tpu.matmul %109, %0, %cst_67 {dimension_numbers = #tpu.dot_dimension_numbers<[1], [0], [0], [1], [0, 0, 1, 1], [], []>} : vector<8x128xbf16>, vector<128x128xbf16>, vector<8x128xf32> -> vector<8x128xf32>
    %114 = arith.addf %112, %113 : vector<8x128xf32>
    %115 = math.tanh %114 : vector<8x128xf32>
    %116 = arith.truncf %115 : vector<8x128xf32> to vector<8x128xbf16>
    %c0_68 = arith.constant 0 : index
    %c2048 = arith.constant 2048 : index
    %117 = vector.load %arg6[%c0_68, %c2048] : memref<8x3584xbf16, #tpu.memory_space<vmem>>, vector<8x128xbf16>
    tpu.vector_store %arg6[%c0_68, %c2048], %116 {strides = array<i32>} : memref<8x3584xbf16, #tpu.memory_space<vmem>>, vector<8x128xbf16>,
    %c17 = arith.constant 17 : index
    %c0_69 = arith.constant 0 : index
    %c0_70 = arith.constant 0 : index
    %118 = vector.load %arg1[%c17, %c0_69, %c0_70] : memref<28x8x128xf32, #tpu.memory_space<vmem>>, vector<1x8x128xf32>
    %119 = vector.shape_cast %118 : vector<1x8x128xf32> to vector<8x128xf32>
    %cst_71 = arith.constant dense<0.000000e+00> : vector<8x128xf32>
    %120 = tpu.matmul %116, %0, %cst_71 {dimension_numbers = #tpu.dot_dimension_numbers<[1], [0], [0], [1], [0, 0, 1, 1], [], []>} : vector<8x128xbf16>, vector<128x128xbf16>, vector<8x128xf32> -> vector<8x128xf32>
    %121 = arith.addf %119, %120 : vector<8x128xf32>
    %122 = math.tanh %121 : vector<8x128xf32>
    %123 = arith.truncf %122 : vector<8x128xf32> to vector<8x128xbf16>
    %c0_72 = arith.constant 0 : index
    %c2176 = arith.constant 2176 : index
    %124 = vector.load %arg6[%c0_72, %c2176] : memref<8x3584xbf16, #tpu.memory_space<vmem>>, vector<8x128xbf16>
    tpu.vector_store %arg6[%c0_72, %c2176], %123 {strides = array<i32>} : memref<8x3584xbf16, #tpu.memory_space<vmem>>, vector<8x128xbf16>,
    %c18 = arith.constant 18 : index
    %c0_73 = arith.constant 0 : index
    %c0_74 = arith.constant 0 : index
    %125 = vector.load %arg1[%c18, %c0_73, %c0_74] : memref<28x8x128xf32, #tpu.memory_space<vmem>>, vector<1x8x128xf32>
    %126 = vector.shape_cast %125 : vector<1x8x128xf32> to vector<8x128xf32>
    %cst_75 = arith.constant dense<0.000000e+00> : vector<8x128xf32>
    %127 = tpu.matmul %123, %0, %cst_75 {dimension_numbers = #tpu.dot_dimension_numbers<[1], [0], [0], [1], [0, 0, 1, 1], [], []>} : vector<8x128xbf16>, vector<128x128xbf16>, vector<8x128xf32> -> vector<8x128xf32>
    %128 = arith.addf %126, %127 : vector<8x128xf32>
    %129 = math.tanh %128 : vector<8x128xf32>
    %130 = arith.truncf %129 : vector<8x128xf32> to vector<8x128xbf16>
    %c0_76 = arith.constant 0 : index
    %c2304 = arith.constant 2304 : index
    %131 = vector.load %arg6[%c0_76, %c2304] : memref<8x3584xbf16, #tpu.memory_space<vmem>>, vector<8x128xbf16>
    tpu.vector_store %arg6[%c0_76, %c2304], %130 {strides = array<i32>} : memref<8x3584xbf16, #tpu.memory_space<vmem>>, vector<8x128xbf16>,
    %c19 = arith.constant 19 : index
    %c0_77 = arith.constant 0 : index
    %c0_78 = arith.constant 0 : index
    %132 = vector.load %arg1[%c19, %c0_77, %c0_78] : memref<28x8x128xf32, #tpu.memory_space<vmem>>, vector<1x8x128xf32>
    %133 = vector.shape_cast %132 : vector<1x8x128xf32> to vector<8x128xf32>
    %cst_79 = arith.constant dense<0.000000e+00> : vector<8x128xf32>
    %134 = tpu.matmul %130, %0, %cst_79 {dimension_numbers = #tpu.dot_dimension_numbers<[1], [0], [0], [1], [0, 0, 1, 1], [], []>} : vector<8x128xbf16>, vector<128x128xbf16>, vector<8x128xf32> -> vector<8x128xf32>
    %135 = arith.addf %133, %134 : vector<8x128xf32>
    %136 = math.tanh %135 : vector<8x128xf32>
    %137 = arith.truncf %136 : vector<8x128xf32> to vector<8x128xbf16>
    %c0_80 = arith.constant 0 : index
    %c2432 = arith.constant 2432 : index
    %138 = vector.load %arg6[%c0_80, %c2432] : memref<8x3584xbf16, #tpu.memory_space<vmem>>, vector<8x128xbf16>
    tpu.vector_store %arg6[%c0_80, %c2432], %137 {strides = array<i32>} : memref<8x3584xbf16, #tpu.memory_space<vmem>>, vector<8x128xbf16>,
    %c20 = arith.constant 20 : index
    %c0_81 = arith.constant 0 : index
    %c0_82 = arith.constant 0 : index
    %139 = vector.load %arg1[%c20, %c0_81, %c0_82] : memref<28x8x128xf32, #tpu.memory_space<vmem>>, vector<1x8x128xf32>
    %140 = vector.shape_cast %139 : vector<1x8x128xf32> to vector<8x128xf32>
    %cst_83 = arith.constant dense<0.000000e+00> : vector<8x128xf32>
    %141 = tpu.matmul %137, %0, %cst_83 {dimension_numbers = #tpu.dot_dimension_numbers<[1], [0], [0], [1], [0, 0, 1, 1], [], []>} : vector<8x128xbf16>, vector<128x128xbf16>, vector<8x128xf32> -> vector<8x128xf32>
    %142 = arith.addf %140, %141 : vector<8x128xf32>
    %143 = math.tanh %142 : vector<8x128xf32>
    %144 = arith.truncf %143 : vector<8x128xf32> to vector<8x128xbf16>
    %c0_84 = arith.constant 0 : index
    %c2560 = arith.constant 2560 : index
    %145 = vector.load %arg6[%c0_84, %c2560] : memref<8x3584xbf16, #tpu.memory_space<vmem>>, vector<8x128xbf16>
    tpu.vector_store %arg6[%c0_84, %c2560], %144 {strides = array<i32>} : memref<8x3584xbf16, #tpu.memory_space<vmem>>, vector<8x128xbf16>,
    %c21 = arith.constant 21 : index
    %c0_85 = arith.constant 0 : index
    %c0_86 = arith.constant 0 : index
    %146 = vector.load %arg1[%c21, %c0_85, %c0_86] : memref<28x8x128xf32, #tpu.memory_space<vmem>>, vector<1x8x128xf32>
    %147 = vector.shape_cast %146 : vector<1x8x128xf32> to vector<8x128xf32>
    %cst_87 = arith.constant dense<0.000000e+00> : vector<8x128xf32>
    %148 = tpu.matmul %144, %0, %cst_87 {dimension_numbers = #tpu.dot_dimension_numbers<[1], [0], [0], [1], [0, 0, 1, 1], [], []>} : vector<8x128xbf16>, vector<128x128xbf16>, vector<8x128xf32> -> vector<8x128xf32>
    %149 = arith.addf %147, %148 : vector<8x128xf32>
    %150 = math.tanh %149 : vector<8x128xf32>
    %151 = arith.truncf %150 : vector<8x128xf32> to vector<8x128xbf16>
    %c0_88 = arith.constant 0 : index
    %c2688 = arith.constant 2688 : index
    %152 = vector.load %arg6[%c0_88, %c2688] : memref<8x3584xbf16, #tpu.memory_space<vmem>>, vector<8x128xbf16>
    tpu.vector_store %arg6[%c0_88, %c2688], %151 {strides = array<i32>} : memref<8x3584xbf16, #tpu.memory_space<vmem>>, vector<8x128xbf16>,
    %c22 = arith.constant 22 : index
    %c0_89 = arith.constant 0 : index
    %c0_90 = arith.constant 0 : index
    %153 = vector.load %arg1[%c22, %c0_89, %c0_90] : memref<28x8x128xf32, #tpu.memory_space<vmem>>, vector<1x8x128xf32>
    %154 = vector.shape_cast %153 : vector<1x8x128xf32> to vector<8x128xf32>
    %cst_91 = arith.constant dense<0.000000e+00> : vector<8x128xf32>
    %155 = tpu.matmul %151, %0, %cst_91 {dimension_numbers = #tpu.dot_dimension_numbers<[1], [0], [0], [1], [0, 0, 1, 1], [], []>} : vector<8x128xbf16>, vector<128x128xbf16>, vector<8x128xf32> -> vector<8x128xf32>
    %156 = arith.addf %154, %155 : vector<8x128xf32>
    %157 = math.tanh %156 : vector<8x128xf32>
    %158 = arith.truncf %157 : vector<8x128xf32> to vector<8x128xbf16>
    %c0_92 = arith.constant 0 : index
    %c2816 = arith.constant 2816 : index
    %159 = vector.load %arg6[%c0_92, %c2816] : memref<8x3584xbf16, #tpu.memory_space<vmem>>, vector<8x128xbf16>
    tpu.vector_store %arg6[%c0_92, %c2816], %158 {strides = array<i32>} : memref<8x3584xbf16, #tpu.memory_space<vmem>>, vector<8x128xbf16>,
    %c23 = arith.constant 23 : index
    %c0_93 = arith.constant 0 : index
    %c0_94 = arith.constant 0 : index
    %160 = vector.load %arg1[%c23, %c0_93, %c0_94] : memref<28x8x128xf32, #tpu.memory_space<vmem>>, vector<1x8x128xf32>
    %161 = vector.shape_cast %160 : vector<1x8x128xf32> to vector<8x128xf32>
    %cst_95 = arith.constant dense<0.000000e+00> : vector<8x128xf32>
    %162 = tpu.matmul %158, %0, %cst_95 {dimension_numbers = #tpu.dot_dimension_numbers<[1], [0], [0], [1], [0, 0, 1, 1], [], []>} : vector<8x128xbf16>, vector<128x128xbf16>, vector<8x128xf32> -> vector<8x128xf32>
    %163 = arith.addf %161, %162 : vector<8x128xf32>
    %164 = math.tanh %163 : vector<8x128xf32>
    %165 = arith.truncf %164 : vector<8x128xf32> to vector<8x128xbf16>
    %c0_96 = arith.constant 0 : index
    %c2944 = arith.constant 2944 : index
    %166 = vector.load %arg6[%c0_96, %c2944] : memref<8x3584xbf16, #tpu.memory_space<vmem>>, vector<8x128xbf16>
    tpu.vector_store %arg6[%c0_96, %c2944], %165 {strides = array<i32>} : memref<8x3584xbf16, #tpu.memory_space<vmem>>, vector<8x128xbf16>,
    %c24 = arith.constant 24 : index
    %c0_97 = arith.constant 0 : index
    %c0_98 = arith.constant 0 : index
    %167 = vector.load %arg1[%c24, %c0_97, %c0_98] : memref<28x8x128xf32, #tpu.memory_space<vmem>>, vector<1x8x128xf32>
    %168 = vector.shape_cast %167 : vector<1x8x128xf32> to vector<8x128xf32>
    %cst_99 = arith.constant dense<0.000000e+00> : vector<8x128xf32>
    %169 = tpu.matmul %165, %0, %cst_99 {dimension_numbers = #tpu.dot_dimension_numbers<[1], [0], [0], [1], [0, 0, 1, 1], [], []>} : vector<8x128xbf16>, vector<128x128xbf16>, vector<8x128xf32> -> vector<8x128xf32>
    %170 = arith.addf %168, %169 : vector<8x128xf32>
    %171 = math.tanh %170 : vector<8x128xf32>
    %172 = arith.truncf %171 : vector<8x128xf32> to vector<8x128xbf16>
    %c0_100 = arith.constant 0 : index
    %c3072 = arith.constant 3072 : index
    %173 = vector.load %arg6[%c0_100, %c3072] : memref<8x3584xbf16, #tpu.memory_space<vmem>>, vector<8x128xbf16>
    tpu.vector_store %arg6[%c0_100, %c3072], %172 {strides = array<i32>} : memref<8x3584xbf16, #tpu.memory_space<vmem>>, vector<8x128xbf16>,
    %c25 = arith.constant 25 : index
    %c0_101 = arith.constant 0 : index
    %c0_102 = arith.constant 0 : index
    %174 = vector.load %arg1[%c25, %c0_101, %c0_102] : memref<28x8x128xf32, #tpu.memory_space<vmem>>, vector<1x8x128xf32>
    %175 = vector.shape_cast %174 : vector<1x8x128xf32> to vector<8x128xf32>
    %cst_103 = arith.constant dense<0.000000e+00> : vector<8x128xf32>
    %176 = tpu.matmul %172, %0, %cst_103 {dimension_numbers = #tpu.dot_dimension_numbers<[1], [0], [0], [1], [0, 0, 1, 1], [], []>} : vector<8x128xbf16>, vector<128x128xbf16>, vector<8x128xf32> -> vector<8x128xf32>
    %177 = arith.addf %175, %176 : vector<8x128xf32>
    %178 = math.tanh %177 : vector<8x128xf32>
    %179 = arith.truncf %178 : vector<8x128xf32> to vector<8x128xbf16>
    %c0_104 = arith.constant 0 : index
    %c3200 = arith.constant 3200 : index
    %180 = vector.load %arg6[%c0_104, %c3200] : memref<8x3584xbf16, #tpu.memory_space<vmem>>, vector<8x128xbf16>
    tpu.vector_store %arg6[%c0_104, %c3200], %179 {strides = array<i32>} : memref<8x3584xbf16, #tpu.memory_space<vmem>>, vector<8x128xbf16>,
    %c26 = arith.constant 26 : index
    %c0_105 = arith.constant 0 : index
    %c0_106 = arith.constant 0 : index
    %181 = vector.load %arg1[%c26, %c0_105, %c0_106] : memref<28x8x128xf32, #tpu.memory_space<vmem>>, vector<1x8x128xf32>
    %182 = vector.shape_cast %181 : vector<1x8x128xf32> to vector<8x128xf32>
    %cst_107 = arith.constant dense<0.000000e+00> : vector<8x128xf32>
    %183 = tpu.matmul %179, %0, %cst_107 {dimension_numbers = #tpu.dot_dimension_numbers<[1], [0], [0], [1], [0, 0, 1, 1], [], []>} : vector<8x128xbf16>, vector<128x128xbf16>, vector<8x128xf32> -> vector<8x128xf32>
    %184 = arith.addf %182, %183 : vector<8x128xf32>
    %185 = math.tanh %184 : vector<8x128xf32>
    %186 = arith.truncf %185 : vector<8x128xf32> to vector<8x128xbf16>
    %c0_108 = arith.constant 0 : index
    %c3328 = arith.constant 3328 : index
    %187 = vector.load %arg6[%c0_108, %c3328] : memref<8x3584xbf16, #tpu.memory_space<vmem>>, vector<8x128xbf16>
    tpu.vector_store %arg6[%c0_108, %c3328], %186 {strides = array<i32>} : memref<8x3584xbf16, #tpu.memory_space<vmem>>, vector<8x128xbf16>,
    %c27 = arith.constant 27 : index
    %c0_109 = arith.constant 0 : index
    %c0_110 = arith.constant 0 : index
    %188 = vector.load %arg1[%c27, %c0_109, %c0_110] : memref<28x8x128xf32, #tpu.memory_space<vmem>>, vector<1x8x128xf32>
    %189 = vector.shape_cast %188 : vector<1x8x128xf32> to vector<8x128xf32>
    %cst_111 = arith.constant dense<0.000000e+00> : vector<8x128xf32>
    %190 = tpu.matmul %186, %0, %cst_111 {dimension_numbers = #tpu.dot_dimension_numbers<[1], [0], [0], [1], [0, 0, 1, 1], [], []>} : vector<8x128xbf16>, vector<128x128xbf16>, vector<8x128xf32> -> vector<8x128xf32>
    %191 = arith.addf %189, %190 : vector<8x128xf32>
    %192 = math.tanh %191 : vector<8x128xf32>
    %193 = arith.truncf %192 : vector<8x128xf32> to vector<8x128xbf16>
    %c0_112 = arith.constant 0 : index
    %c3456 = arith.constant 3456 : index
    %194 = vector.load %arg6[%c0_112, %c3456] : memref<8x3584xbf16, #tpu.memory_space<vmem>>, vector<8x128xbf16>
    tpu.vector_store %arg6[%c0_112, %c3456], %193 {strides = array<i32>} : memref<8x3584xbf16, #tpu.memory_space<vmem>>, vector<8x128xbf16>,
    %c0_113 = arith.constant 0 : index
    %c0_114 = arith.constant 0 : index
    %195 = vector.load %arg4[%c0_113, %c0_114] : memref<1x128xf32, #tpu.memory_space<vmem>>, vector<1x128xf32>
    %196 = vector.shape_cast %195 : vector<1x128xf32> to vector<1x128xf32>
    %197 = vector.broadcast %196 : vector<1x128xf32> to vector<8x128xf32>
    %c0_115 = arith.constant 0 : index
    %c0_116 = arith.constant 0 : index
    %198 = vector.load %arg6[%c0_115, %c0_116] : memref<8x3584xbf16, #tpu.memory_space<vmem>>, vector<8x3584xbf16>
    %c0_117 = arith.constant 0 : index
    %c0_118 = arith.constant 0 : index
    %199 = vector.load %arg3[%c0_117, %c0_118] : memref<3584x128xbf16, #tpu.memory_space<vmem>>, vector<3584x128xbf16>
    %cst_119 = arith.constant dense<0.000000e+00> : vector<8x128xf32>
    %200 = tpu.matmul %198, %199, %cst_119 {dimension_numbers = #tpu.dot_dimension_numbers<[1], [0], [0], [1], [0, 0, 1, 1], [], []>} : vector<8x3584xbf16>, vector<3584x128xbf16>, vector<8x128xf32> -> vector<8x128xf32>
    %201 = arith.addf %197, %200 : vector<8x128xf32>
    %c0_120 = arith.constant 0 : index
    %c0_121 = arith.constant 0 : index
    %202 = vector.load %arg5[%c0_120, %c0_121] : memref<8x128xf32, #tpu.memory_space<vmem>>, vector<8x128xf32>
    tpu.vector_store %arg5[%c0_120, %c0_121], %201 {strides = array<i32>} : memref<8x128xf32, #tpu.memory_space<vmem>>, vector<8x128xf32>,
    return
  }
  func.func @transform_0(%arg0: i32) -> (i32, i32, i32) {
    %c0_i32 = arith.constant 0 : i32
    %c0_i32_0 = arith.constant 0 : i32
    %c0_i32_1 = arith.constant 0 : i32
    return %c0_i32, %arg0, %c0_i32_0 : i32, i32, i32
  }
  func.func @transform_1(%arg0: i32) -> (i32, i32) {
    %c0_i32 = arith.constant 0 : i32
    %c0_i32_0 = arith.constant 0 : i32
    %c0_i32_1 = arith.constant 0 : i32
    return %c0_i32, %c0_i32_0 : i32, i32
  }
  func.func @transform_2(%arg0: i32) -> (i32, i32) {
    %c0_i32 = arith.constant 0 : i32
    %c0_i32_0 = arith.constant 0 : i32
    %c0_i32_1 = arith.constant 0 : i32
    return %c0_i32, %c0_i32_0 : i32, i32
  }
  func.func @transform_3(%arg0: i32) -> (i32, i32) {
    %c0_i32 = arith.constant 0 : i32
    %c0_i32_0 = arith.constant 0 : i32
    %c0_i32_1 = arith.constant 0 : i32
    return %c0_i32, %c0_i32_0 : i32, i32
  }
  func.func @transform_4(%arg0: i32) -> (i32, i32) {
    %c0_i32 = arith.constant 0 : i32
    %c0_i32_0 = arith.constant 0 : i32
    return %arg0, %c0_i32 : i32, i32
  }
}

</mosaic_0001>

<llo_original>
// kernel: tpu_custom_call.1
$region0: #{tpu_custom_call.1}
  #allocation0 [shape = 'u32[]', space=smem, size = 0x4, offset = 0x4, fixed_abs, tag = 'smem constant byte address 0x4 - core index']
  #allocation1 [shape = 'u32[72,128]{1,0:T(1,128)}', space=vmem, size = 0x9000, scoped, tag = 'internal scratch']
  #allocation2 [shape = 'bf16[8,3584]{1,0:T(8,128)(2,1)}', space=vmem, size = 0xe000, scoped, tag = 'scratch operand']
  %s0 = inlined_call_operand.hbm [shape: f32[28,8,128], index: 0, kind: input, shape index: {}]
  %s1 = inlined_call_operand.hbm [shape: bf16[128,128], index: 1, kind: input, shape index: {}]
  %s2 = inlined_call_operand.hbm [shape: bf16[3584,128], index: 2, kind: input, shape index: {}]
  %s3 = inlined_call_operand.vmem [shape: f32[1,128], index: 3, kind: input, shape index: {}]
  %s4 = inlined_call_operand.hbm [shape: f32[8,128], index: 4, kind: output, shape index: {}]
  %s5 = sld [smem:[#allocation0]]
  $region38: #{tpu_custom_call.1} parent=0
    _
  %s7 = ssub.s32 1, %s5
  %s8 = scalar_select 0, %s7, %s5
  $region1: #{tpu_custom_call.1} parent=0
    #allocation3 [shape = 'u8[114688]{0}', space=vmem, size = 0x1c000, scoped, tag = 'input window, operand 0, single buffered']
    #allocation4 [shape = 's32[1]{0}', space=sflag, size = 0x4, scoped, tag = 'scoped memory for tpu_custom_call.1']
    #allocation5 [shape = 's32[1]{0}', space=sflag, size = 0x4, scoped, tag = 'scoped memory for tpu_custom_call.1']
    #allocation6 [shape = 'u8[32768]{0}', space=vmem, size = 0x8000, scoped, tag = 'input window, operand 1, single buffered']
    #allocation7 [shape = 's32[1]{0}', space=sflag, size = 0x4, scoped, tag = 'scoped memory for tpu_custom_call.1']
    #allocation8 [shape = 'u8[917504]{0}', space=vmem, size = 0xe0000, scoped, tag = 'input window, operand 2, single buffered']
    #allocation9 [shape = 'u8[4096]{0}', space=vmem, size = 0x1000, scoped, tag = 'output window, operand 0, single buffered']
    %9 = vsyncpa [#allocation4], 0
    %10 = vsyncpa [#allocation7], 0
    %11 = vsyncpa [#allocation5], 0
    // Predicated region
    $region2: #{tpu_custom_call.1} parent=1 // pred_check
      _
    $region3: #{tpu_custom_call.1} parent=1 // pred_check_branch
      %13 = sbr.rel (0) target = $region5
    $region4: #{tpu_custom_call.1} parent=1 // pred_region
      %15 = vsyncadd [#allocation4], 0
      %s16 = sshll.u32 %s0, 4
      %s17 = int_to_ptr.hbm [resolvable:$true] %s16
      %s18 = sshll.u32 [#allocation3], 4
      %s19 = int_to_ptr.vmem [resolvable:$true] %s18
      %24 = dma.hbm_to_vmem [thread:$0]  %s17, 3584, %s19, [#allocation4], 128, 128, 8
    $region5: #{tpu_custom_call.1} parent=1 // pred_fallthru
      _
    // Predicated region
    $region6: #{tpu_custom_call.1} parent=1 // pred_check
      _
    $region7: #{tpu_custom_call.1} parent=1 // pred_check_branch
      %26 = sbr.rel (0) target = $region9
    $region8: #{tpu_custom_call.1} parent=1 // pred_region
      %28 = vsyncadd [#allocation7], 0
      %s29 = sshll.u32 %s1, 4
      %s30 = int_to_ptr.hbm [resolvable:$true] %s29
      %s31 = sshll.u32 [#allocation6], 4
      %s32 = int_to_ptr.vmem [resolvable:$true] %s31
      %37 = dma.hbm_to_vmem [thread:$0]  %s30, 1024, %s32, [#allocation7], 64, 64, 4
    $region9: #{tpu_custom_call.1} parent=1 // pred_fallthru
      _
    // Predicated region
    $region10: #{tpu_custom_call.1} parent=1 // pred_check
      _
    $region11: #{tpu_custom_call.1} parent=1 // pred_check_branch
      %39 = sbr.rel (0) target = $region13
    $region12: #{tpu_custom_call.1} parent=1 // pred_region
      %41 = vsyncadd [#allocation7], 0
      %s42 = sshll.u32 %s2, 4
      %s43 = int_to_ptr.hbm [resolvable:$true] %s42
      %s44 = sshll.u32 [#allocation8], 4
      %s45 = int_to_ptr.vmem [resolvable:$true] %s44
      %50 = dma.hbm_to_vmem [thread:$0]  %s43, 28672, %s45, [#allocation7], 64, 64, 4
    $region13: #{tpu_custom_call.1} parent=1 // pred_fallthru
      _
    // Predicated region
    $region14: #{tpu_custom_call.1} parent=1 // pred_check
      _
    $region15: #{tpu_custom_call.1} parent=1 // pred_check_branch
      %52 = sbr.rel (0) target = $region17
    $region16: #{tpu_custom_call.1} parent=1 // pred_region
      _
    $region17: #{tpu_custom_call.1} parent=1 // pred_fallthru
      _
    // Predicated region
    $region18: #{tpu_custom_call.1} parent=1 // pred_check
      _
    $region19: #{tpu_custom_call.1} parent=1 // pred_check_branch
      %54 = sbr.rel (0) target = $region21
    $region20: #{tpu_custom_call.1} parent=1 // pred_region
      %56 = dma.done [#allocation4], 3584
    $region21: #{tpu_custom_call.1} parent=1 // pred_fallthru
      _
    // Predicated region
    $region22: #{tpu_custom_call.1} parent=1 // pred_check
      _
    $region23: #{tpu_custom_call.1} parent=1 // pred_check_branch
      %58 = sbr.rel (0) target = $region25
    $region24: #{tpu_custom_call.1} parent=1 // pred_region
      %60 = dma.done [#allocation7], 1024
    $region25: #{tpu_custom_call.1} parent=1 // pred_fallthru
      _
    // Predicated region
    $region26: #{tpu_custom_call.1} parent=1 // pred_check
      _
    $region27: #{tpu_custom_call.1} parent=1 // pred_check_branch
      %62 = sbr.rel (0) target = $region29
    $region28: #{tpu_custom_call.1} parent=1 // pred_region
      %64 = dma.done [#allocation7], 28672
    $region29: #{tpu_custom_call.1} parent=1 // pred_fallthru
      _
    %v65 = vld [vmem:[#allocation6] sm:$0xf]
    %v66 = vld [vmem:[#allocation6 + $0x4] sm:$0xf]
    %v67 = vld [vmem:[#allocation6 + $0x8] sm:$0xf]
    %v68 = vld [vmem:[#allocation6 + $0xc] sm:$0xf]
    %v69 = vld [vmem:[#allocation6 + $0x10] sm:$0xf]
    %v70 = vld [vmem:[#allocation6 + $0x14] sm:$0xf]
    %v71 = vld [vmem:[#allocation6 + $0x18] sm:$0xf]
    %v72 = vld [vmem:[#allocation6 + $0x1c] sm:$0xf]
    %v73 = vld [vmem:[#allocation6 + $0x20] sm:$0xf]
    %v74 = vld [vmem:[#allocation6 + $0x24] sm:$0xf]
    %v75 = vld [vmem:[#allocation6 + $0x28] sm:$0xf]
    %v76 = vld [vmem:[#allocation6 + $0x2c] sm:$0xf]
    %v77 = vld [vmem:[#allocation6 + $0x30] sm:$0xf]
    %v78 = vld [vmem:[#allocation6 + $0x34] sm:$0xf]
    %v79 = vld [vmem:[#allocation6 + $0x38] sm:$0xf]
    %v80 = vld [vmem:[#allocation6 + $0x3c] sm:$0xf]
    %v81 = vld [vmem:[#allocation3] sm:$0xff]
    %v82 = vtanh.pop %v81
    %v83 = vpack.c.bf16 %v82, %v82
    %84 = vst [vmem:[#allocation2] sm:$0xf] %v83
    %s85 = scalar_lea.vmem [#allocation3], 8
    %v86 = vld [vmem:[%s85] sm:$0xff]
    %v103 = vunpack.c.l.b16 %v65
    %v104 = vunpack.c.l.b16 %v66
    %v105 = vunpack.c.l.b16 %v67
    %v106 = vunpack.c.l.b16 %v68
    %v107 = vunpack.c.l.b16 %v69
    %v108 = vunpack.c.l.b16 %v70
    %v109 = vunpack.c.l.b16 %v71
    %v110 = vunpack.c.l.b16 %v72
    %v111 = vunpack.c.l.b16 %v73
    %v112 = vunpack.c.l.b16 %v74
    %v113 = vunpack.c.l.b16 %v75
    %v114 = vunpack.c.l.b16 %v76
    %v115 = vunpack.c.l.b16 %v77
    %v116 = vunpack.c.l.b16 %v78
    %v117 = vunpack.c.l.b16 %v79
    %v118 = vunpack.c.l.b16 %v80
    %v119 = vpack.c.b16 %v104, %v103
    %v120 = vpack.c.b16 %v106, %v105
    %v121 = vpack.c.b16 %v108, %v107
    %v122 = vpack.c.b16 %v110, %v109
    %v123 = vpack.c.b16 %v112, %v111
    %v124 = vpack.c.b16 %v114, %v113
    %v125 = vpack.c.b16 %v116, %v115
    %v126 = vpack.c.b16 %v118, %v117
    %135 = vmatpush.bf16.msra.mxu0 %v126
    %136 = vmatpush.bf16.msra.mxu0 %v125
    %137 = vmatpush.bf16.msra.mxu0 %v124
    %138 = vmatpush.bf16.msra.mxu0 %v123
    %139 = vmatpush.bf16.msra.mxu0 %v122
    %140 = vmatpush.bf16.msra.mxu0 %v121
    %141 = vmatpush.bf16.msra.mxu0 %v120
    %142 = vmatpush.bf16.msra.mxu0 %v119
    %143 = vmatmul.bf16.gmra.mxu0 %v83
    %v144 = vpop.f32.mrf.mxu0
    %v145 = vadd.f32 0.0, %v144
    %v146 = vpop.f32.mrf.mxu0
    %147 = vdwg.mxu0
    %v148 = vadd.f32 %v86, %v145
    %v149 = vtanh.pop %v148
    %v150 = vpack.c.bf16 %v149, %v149
    %151 = vst [vmem:[#allocation2 + $0x4] sm:$0xf] %v150
    %s152 = scalar_lea.vmem [#allocation3], 16
    %v153 = vld [vmem:[%s152] sm:$0xff]
    %154 = vmatpush.bf16.msra.mxu0 %v126
    %155 = vmatpush.bf16.msra.mxu0 %v125
    %156 = vmatpush.bf16.msra.mxu0 %v124
    %157 = vmatpush.bf16.msra.mxu0 %v123
    %158 = vmatpush.bf16.msra.mxu0 %v122
    %159 = vmatpush.bf16.msra.mxu0 %v121
    %160 = vmatpush.bf16.msra.mxu0 %v120
    %161 = vmatpush.bf16.msra.mxu0 %v119
    %162 = vmatmul.bf16.gmra.mxu0 %v150
    %v163 = vpop.f32.mrf.mxu0
    %v164 = vadd.f32 0.0, %v163
    %v165 = vpop.f32.mrf.mxu0
    %166 = vdwg.mxu0
    %v167 = vadd.f32 %v153, %v164
    %v168 = vtanh.pop %v167
    %v169 = vpack.c.bf16 %v168, %v168
    %170 = vst [vmem:[#allocation2 + $0x8] sm:$0xf] %v169
    %s171 = scalar_lea.vmem [#allocation3], 24
    %v172 = vld [vmem:[%s171] sm:$0xff]
    %173 = vmatpush.bf16.msra.mxu0 %v126
    %174 = vmatpush.bf16.msra.mxu0 %v125
    %175 = vmatpush.bf16.msra.mxu0 %v124
    %176 = vmatpush.bf16.msra.mxu0 %v123
    %177 = vmatpush.bf16.msra.mxu0 %v122
    %178 = vmatpush.bf16.msra.mxu0 %v121
    %179 = vmatpush.bf16.msra.mxu0 %v120
    %180 = vmatpush.bf16.msra.mxu0 %v119
    %181 = vmatmul.bf16.gmra.mxu0 %v169
    %v182 = vpop.f32.mrf.mxu0
    %v183 = vadd.f32 0.0, %v182
    %v184 = vpop.f32.mrf.mxu0
    %185 = vdwg.mxu0
    %v186 = vadd.f32 %v172, %v183
    %v187 = vtanh.pop %v186
    %v188 = vpack.c.bf16 %v187, %v187
    %189 = vst [vmem:[#allocation2 + $0xc] sm:$0xf] %v188
    %s190 = scalar_lea.vmem [#allocation3], 32
    %v191 = vld [vmem:[%s190] sm:$0xff]
    %192 = vmatpush.bf16.msra.mxu0 %v126
    %193 = vmatpush.bf16.msra.mxu0 %v125
    %194 = vmatpush.bf16.msra.mxu0 %v124
    %195 = vmatpush.bf16.msra.mxu0 %v123
    %196 = vmatpush.bf16.msra.mxu0 %v122
    %197 = vmatpush.bf16.msra.mxu0 %v121
    %198 = vmatpush.bf16.msra.mxu0 %v120
    %199 = vmatpush.bf16.msra.mxu0 %v119
    %200 = vmatmul.bf16.gmra.mxu0 %v188
    %v201 = vpop.f32.mrf.mxu0
    %v202 = vadd.f32 0.0, %v201
    %v203 = vpop.f32.mrf.mxu0
    %204 = vdwg.mxu0
    %v205 = vadd.f32 %v191, %v202
    %v206 = vtanh.pop %v205
    %v207 = vpack.c.bf16 %v206, %v206
    %208 = vst [vmem:[#allocation2 + $0x10] sm:$0xf] %v207
    %s209 = scalar_lea.vmem [#allocation3], 40
    %v210 = vld [vmem:[%s209] sm:$0xff]
    %211 = vmatpush.bf16.msra.mxu0 %v126
    %212 = vmatpush.bf16.msra.mxu0 %v125
    %213 = vmatpush.bf16.msra.mxu0 %v124
    %214 = vmatpush.bf16.msra.mxu0 %v123
    %215 = vmatpush.bf16.msra.mxu0 %v122
    %216 = vmatpush.bf16.msra.mxu0 %v121
    %217 = vmatpush.bf16.msra.mxu0 %v120
    %218 = vmatpush.bf16.msra.mxu0 %v119
    %219 = vmatmul.bf16.gmra.mxu0 %v207
    %v220 = vpop.f32.mrf.mxu0
    %v221 = vadd.f32 0.0, %v220
    %v222 = vpop.f32.mrf.mxu0
    %223 = vdwg.mxu0
    %v224 = vadd.f32 %v210, %v221
    %v225 = vtanh.pop %v224
    %v226 = vpack.c.bf16 %v225, %v225
    %227 = vst [vmem:[#allocation2 + $0x14] sm:$0xf] %v226
    %s228 = scalar_lea.vmem [#allocation3], 48
    %v229 = vld [vmem:[%s228] sm:$0xff]
    %230 = vmatpush.bf16.msra.mxu0 %v126
    %231 = vmatpush.bf16.msra.mxu0 %v125
    %232 = vmatpush.bf16.msra.mxu0 %v124
    %233 = vmatpush.bf16.msra.mxu0 %v123
    %234 = vmatpush.bf16.msra.mxu0 %v122
    %235 = vmatpush.bf16.msra.mxu0 %v121
    %236 = vmatpush.bf16.msra.mxu0 %v120
    %237 = vmatpush.bf16.msra.mxu0 %v119
    %238 = vmatmul.bf16.gmra.mxu0 %v226
    %v239 = vpop.f32.mrf.mxu0
    %v240 = vadd.f32 0.0, %v239
    %v241 = vpop.f32.mrf.mxu0
    %242 = vdwg.mxu0
    %v243 = vadd.f32 %v229, %v240
    %v244 = vtanh.pop %v243
    %v245 = vpack.c.bf16 %v244, %v244
    %246 = vst [vmem:[#allocation2 + $0x18] sm:$0xf] %v245
    %s247 = scalar_lea.vmem [#allocation3], 56
    %v248 = vld [vmem:[%s247] sm:$0xff]
    %249 = vmatpush.bf16.msra.mxu0 %v126
    %250 = vmatpush.bf16.msra.mxu0 %v125
    %251 = vmatpush.bf16.msra.mxu0 %v124
    %252 = vmatpush.bf16.msra.mxu0 %v123
    %253 = vmatpush.bf16.msra.mxu0 %v122
    %254 = vmatpush.bf16.msra.mxu0 %v121
    %255 = vmatpush.bf16.msra.mxu0 %v120
    %256 = vmatpush.bf16.msra.mxu0 %v119
    %257 = vmatmul.bf16.gmra.mxu0 %v245
    %v258 = vpop.f32.mrf.mxu0
    %v259 = vadd.f32 0.0, %v258
    %v260 = vpop.f32.mrf.mxu0
    %261 = vdwg.mxu0
    %v262 = vadd.f32 %v248, %v259
    %v263 = vtanh.pop %v262
    %v264 = vpack.c.bf16 %v263, %v263
    %265 = vst [vmem:[#allocation2 + $0x1c] sm:$0xf] %v264
    %s266 = scalar_lea.vmem [#allocation3], 64
    %v267 = vld [vmem:[%s266] sm:$0xff]
    %268 = vmatpush.bf16.msra.mxu0 %v126
    %269 = vmatpush.bf16.msra.mxu0 %v125
    %270 = vmatpush.bf16.msra.mxu0 %v124
    %271 = vmatpush.bf16.msra.mxu0 %v123
    %272 = vmatpush.bf16.msra.mxu0 %v122
    %273 = vmatpush.bf16.msra.mxu0 %v121
    %274 = vmatpush.bf16.msra.mxu0 %v120
    %275 = vmatpush.bf16.msra.mxu0 %v119
    %276 = vmatmul.bf16.gmra.mxu0 %v264
    %v277 = vpop.f32.mrf.mxu0
    %v278 = vadd.f32 0.0, %v277
    %v279 = vpop.f32.mrf.mxu0
    %280 = vdwg.mxu0
    %v281 = vadd.f32 %v267, %v278
    %v282 = vtanh.pop %v281
    %v283 = vpack.c.bf16 %v282, %v282
    %284 = vst [vmem:[#allocation2 + $0x20] sm:$0xf] %v283
    %s285 = scalar_lea.vmem [#allocation3], 72
    %v286 = vld [vmem:[%s285] sm:$0xff]
    %287 = vmatpush.bf16.msra.mxu0 %v126
    %288 = vmatpush.bf16.msra.mxu0 %v125
    %289 = vmatpush.bf16.msra.mxu0 %v124
    %290 = vmatpush.bf16.msra.mxu0 %v123
    %291 = vmatpush.bf16.msra.mxu0 %v122
    %292 = vmatpush.bf16.msra.mxu0 %v121
    %293 = vmatpush.bf16.msra.mxu0 %v120
    %294 = vmatpush.bf16.msra.mxu0 %v119
    %295 = vmatmul.bf16.gmra.mxu0 %v283
    %v296 = vpop.f32.mrf.mxu0
    %v297 = vadd.f32 0.0, %v296
    %v298 = vpop.f32.mrf.mxu0
    %299 = vdwg.mxu0
    %v300 = vadd.f32 %v286, %v297
    %v301 = vtanh.pop %v300
    %v302 = vpack.c.bf16 %v301, %v301
    %303 = vst [vmem:[#allocation2 + $0x24] sm:$0xf] %v302
    %s304 = scalar_lea.vmem [#allocation3], 80
    %v305 = vld [vmem:[%s304] sm:$0xff]
    %306 = vmatpush.bf16.msra.mxu0 %v126
    %307 = vmatpush.bf16.msra.mxu0 %v125
    %308 = vmatpush.bf16.msra.mxu0 %v124
    %309 = vmatpush.bf16.msra.mxu0 %v123
    %310 = vmatpush.bf16.msra.mxu0 %v122
    %311 = vmatpush.bf16.msra.mxu0 %v121
    %312 = vmatpush.bf16.msra.mxu0 %v120
    %313 = vmatpush.bf16.msra.mxu0 %v119
    %314 = vmatmul.bf16.gmra.mxu0 %v302
    %v315 = vpop.f32.mrf.mxu0
    %v316 = vadd.f32 0.0, %v315
    %v317 = vpop.f32.mrf.mxu0
    %318 = vdwg.mxu0
    %v319 = vadd.f32 %v305, %v316
    %v320 = vtanh.pop %v319
    %v321 = vpack.c.bf16 %v320, %v320
    %322 = vst [vmem:[#allocation2 + $0x28] sm:$0xf] %v321
    %s323 = scalar_lea.vmem [#allocation3], 88
    %v324 = vld [vmem:[%s323] sm:$0xff]
    %325 = vmatpush.bf16.msra.mxu0 %v126
    %326 = vmatpush.bf16.msra.mxu0 %v125
    %327 = vmatpush.bf16.msra.mxu0 %v124
    %328 = vmatpush.bf16.msra.mxu0 %v123
    %329 = vmatpush.bf16.msra.mxu0 %v122
    %330 = vmatpush.bf16.msra.mxu0 %v121
    %331 = vmatpush.bf16.msra.mxu0 %v120
    %332 = vmatpush.bf16.msra.mxu0 %v119
    %333 = vmatmul.bf16.gmra.mxu0 %v321
    %v334 = vpop.f32.mrf.mxu0
    %v335 = vadd.f32 0.0, %v334
    %v336 = vpop.f32.mrf.mxu0
    %337 = vdwg.mxu0
    %v338 = vadd.f32 %v324, %v335
    %v339 = vtanh.pop %v338
    %v340 = vpack.c.bf16 %v339, %v339
    %341 = vst [vmem:[#allocation2 + $0x2c] sm:$0xf] %v340
    %s342 = scalar_lea.vmem [#allocation3], 96
    %v343 = vld [vmem:[%s342] sm:$0xff]
    %344 = vmatpush.bf16.msra.mxu0 %v126
    %345 = vmatpush.bf16.msra.mxu0 %v125
    %346 = vmatpush.bf16.msra.mxu0 %v124
    %347 = vmatpush.bf16.msra.mxu0 %v123
    %348 = vmatpush.bf16.msra.mxu0 %v122
    %349 = vmatpush.bf16.msra.mxu0 %v121
    %350 = vmatpush.bf16.msra.mxu0 %v120
    %351 = vmatpush.bf16.msra.mxu0 %v119
    %352 = vmatmul.bf16.gmra.mxu0 %v340
    %v353 = vpop.f32.mrf.mxu0
    %v354 = vadd.f32 0.0, %v353
    %v355 = vpop.f32.mrf.mxu0
    %356 = vdwg.mxu0
    %v357 = vadd.f32 %v343, %v354
    %v358 = vtanh.pop %v357
    %v359 = vpack.c.bf16 %v358, %v358
    %360 = vst [vmem:[#allocation2 + $0x30] sm:$0xf] %v359
    %s361 = scalar_lea.vmem [#allocation3], 104
    %v362 = vld [vmem:[%s361] sm:$0xff]
    %363 = vmatpush.bf16.msra.mxu0 %v126
    %364 = vmatpush.bf16.msra.mxu0 %v125
    %365 = vmatpush.bf16.msra.mxu0 %v124
    %366 = vmatpush.bf16.msra.mxu0 %v123
    %367 = vmatpush.bf16.msra.mxu0 %v122
    %368 = vmatpush.bf16.msra.mxu0 %v121
    %369 = vmatpush.bf16.msra.mxu0 %v120
    %370 = vmatpush.bf16.msra.mxu0 %v119
    %371 = vmatmul.bf16.gmra.mxu0 %v359
    %v372 = vpop.f32.mrf.mxu0
    %v373 = vadd.f32 0.0, %v372
    %v374 = vpop.f32.mrf.mxu0
    %375 = vdwg.mxu0
    %v376 = vadd.f32 %v362, %v373
    %v377 = vtanh.pop %v376
    %v378 = vpack.c.bf16 %v377, %v377
    %379 = vst [vmem:[#allocation2 + $0x34] sm:$0xf] %v378
    %s380 = scalar_lea.vmem [#allocation3], 112
    %v381 = vld [vmem:[%s380] sm:$0xff]
    %382 = vmatpush.bf16.msra.mxu0 %v126
    %383 = vmatpush.bf16.msra.mxu0 %v125
    %384 = vmatpush.bf16.msra.mxu0 %v124
    %385 = vmatpush.bf16.msra.mxu0 %v123
    %386 = vmatpush.bf16.msra.mxu0 %v122
    %387 = vmatpush.bf16.msra.mxu0 %v121
    %388 = vmatpush.bf16.msra.mxu0 %v120
    %389 = vmatpush.bf16.msra.mxu0 %v119
    %390 = vmatmul.bf16.gmra.mxu0 %v378
    %v391 = vpop.f32.mrf.mxu0
    %v392 = vadd.f32 0.0, %v391
    %v393 = vpop.f32.mrf.mxu0
    %394 = vdwg.mxu0
    %v395 = vadd.f32 %v381, %v392
    %v396 = vtanh.pop %v395
    %v397 = vpack.c.bf16 %v396, %v396
    %398 = vst [vmem:[#allocation2 + $0x38] sm:$0xf] %v397
    %s399 = scalar_lea.vmem [#allocation3], 120
    %v400 = vld [vmem:[%s399] sm:$0xff]
    %401 = vmatpush.bf16.msra.mxu0 %v126
    %402 = vmatpush.bf16.msra.mxu0 %v125
    %403 = vmatpush.bf16.msra.mxu0 %v124
    %404 = vmatpush.bf16.msra.mxu0 %v123
    %405 = vmatpush.bf16.msra.mxu0 %v122
    %406 = vmatpush.bf16.msra.mxu0 %v121
    %407 = vmatpush.bf16.msra.mxu0 %v120
    %408 = vmatpush.bf16.msra.mxu0 %v119
    %409 = vmatmul.bf16.gmra.mxu0 %v397
    %v410 = vpop.f32.mrf.mxu0
    %v411 = vadd.f32 0.0, %v410
    %v412 = vpop.f32.mrf.mxu0
    %413 = vdwg.mxu0
    %v414 = vadd.f32 %v400, %v411
    %v415 = vtanh.pop %v414
    %v416 = vpack.c.bf16 %v415, %v415
    %417 = vst [vmem:[#allocation2 + $0x3c] sm:$0xf] %v416
    %s418 = scalar_lea.vmem [#allocation3], 128
    %v419 = vld [vmem:[%s418] sm:$0xff]
    %420 = vmatpush.bf16.msra.mxu0 %v126
    %421 = vmatpush.bf16.msra.mxu0 %v125
    %422 = vmatpush.bf16.msra.mxu0 %v124
    %423 = vmatpush.bf16.msra.mxu0 %v123
    %424 = vmatpush.bf16.msra.mxu0 %v122
    %425 = vmatpush.bf16.msra.mxu0 %v121
    %426 = vmatpush.bf16.msra.mxu0 %v120
    %427 = vmatpush.bf16.msra.mxu0 %v119
    %428 = vmatmul.bf16.gmra.mxu0 %v416
    %v429 = vpop.f32.mrf.mxu0
    %v430 = vadd.f32 0.0, %v429
    %v431 = vpop.f32.mrf.mxu0
    %432 = vdwg.mxu0
    %v433 = vadd.f32 %v419, %v430
    %v434 = vtanh.pop %v433
    %v435 = vpack.c.bf16 %v434, %v434
    %436 = vst [vmem:[#allocation2 + $0x40] sm:$0xf] %v435
    %s437 = scalar_lea.vmem [#allocation3], 136
    %v438 = vld [vmem:[%s437] sm:$0xff]
    %439 = vmatpush.bf16.msra.mxu0 %v126
    %440 = vmatpush.bf16.msra.mxu0 %v125
    %441 = vmatpush.bf16.msra.mxu0 %v124
    %442 = vmatpush.bf16.msra.mxu0 %v123
    %443 = vmatpush.bf16.msra.mxu0 %v122
    %444 = vmatpush.bf16.msra.mxu0 %v121
    %445 = vmatpush.bf16.msra.mxu0 %v120
    %446 = vmatpush.bf16.msra.mxu0 %v119
    %447 = vmatmul.bf16.gmra.mxu0 %v435
    %v448 = vpop.f32.mrf.mxu0
    %v449 = vadd.f32 0.0, %v448
    %v450 = vpop.f32.mrf.mxu0
    %451 = vdwg.mxu0
    %v452 = vadd.f32 %v438, %v449
    %v453 = vtanh.pop %v452
    %v454 = vpack.c.bf16 %v453, %v453
    %455 = vst [vmem:[#allocation2 + $0x44] sm:$0xf] %v454
    %s456 = scalar_lea.vmem [#allocation3], 144
    %v457 = vld [vmem:[%s456] sm:$0xff]
    %458 = vmatpush.bf16.msra.mxu0 %v126
    %459 = vmatpush.bf16.msra.mxu0 %v125
    %460 = vmatpush.bf16.msra.mxu0 %v124
    %461 = vmatpush.bf16.msra.mxu0 %v123
    %462 = vmatpush.bf16.msra.mxu0 %v122
    %463 = vmatpush.bf16.msra.mxu0 %v121
    %464 = vmatpush.bf16.msra.mxu0 %v120
    %465 = vmatpush.bf16.msra.mxu0 %v119
    %466 = vmatmul.bf16.gmra.mxu0 %v454
    %v467 = vpop.f32.mrf.mxu0
    %v468 = vadd.f32 0.0, %v467
    %v469 = vpop.f32.mrf.mxu0
    %470 = vdwg.mxu0
    %v471 = vadd.f32 %v457, %v468
    %v472 = vtanh.pop %v471
    %v473 = vpack.c.bf16 %v472, %v472
    %474 = vst [vmem:[#allocation2 + $0x48] sm:$0xf] %v473
    %s475 = scalar_lea.vmem [#allocation3], 152
    %v476 = vld [vmem:[%s475] sm:$0xff]
    %477 = vmatpush.bf16.msra.mxu0 %v126
    %478 = vmatpush.bf16.msra.mxu0 %v125
    %479 = vmatpush.bf16.msra.mxu0 %v124
    %480 = vmatpush.bf16.msra.mxu0 %v123
    %481 = vmatpush.bf16.msra.mxu0 %v122
    %482 = vmatpush.bf16.msra.mxu0 %v121
    %483 = vmatpush.bf16.msra.mxu0 %v120
    %484 = vmatpush.bf16.msra.mxu0 %v119
    %485 = vmatmul.bf16.gmra.mxu0 %v473
    %v486 = vpop.f32.mrf.mxu0
    %v487 = vadd.f32 0.0, %v486
    %v488 = vpop.f32.mrf.mxu0
    %489 = vdwg.mxu0
    %v490 = vadd.f32 %v476, %v487
    %v491 = vtanh.pop %v490
    %v492 = vpack.c.bf16 %v491, %v491
    %493 = vst [vmem:[#allocation2 + $0x4c] sm:$0xf] %v492
    %s494 = scalar_lea.vmem [#allocation3], 160
    %v495 = vld [vmem:[%s494] sm:$0xff]
    %496 = vmatpush.bf16.msra.mxu0 %v126
    %497 = vmatpush.bf16.msra.mxu0 %v125
    %498 = vmatpush.bf16.msra.mxu0 %v124
    %499 = vmatpush.bf16.msra.mxu0 %v123
    %500 = vmatpush.bf16.msra.mxu0 %v122
    %501 = vmatpush.bf16.msra.mxu0 %v121
    %502 = vmatpush.bf16.msra.mxu0 %v120
    %503 = vmatpush.bf16.msra.mxu0 %v119
    %504 = vmatmul.bf16.gmra.mxu0 %v492
    %v505 = vpop.f32.mrf.mxu0
    %v506 = vadd.f32 0.0, %v505
    %v507 = vpop.f32.mrf.mxu0
    %508 = vdwg.mxu0
    %v509 = vadd.f32 %v495, %v506
    %v510 = vtanh.pop %v509
    %v511 = vpack.c.bf16 %v510, %v510
    %512 = vst [vmem:[#allocation2 + $0x50] sm:$0xf] %v511
    %s513 = scalar_lea.vmem [#allocation3], 168
    %v514 = vld [vmem:[%s513] sm:$0xff]
    %515 = vmatpush.bf16.msra.mxu0 %v126
    %516 = vmatpush.bf16.msra.mxu0 %v125
    %517 = vmatpush.bf16.msra.mxu0 %v124
    %518 = vmatpush.bf16.msra.mxu0 %v123
    %519 = vmatpush.bf16.msra.mxu0 %v122
    %520 = vmatpush.bf16.msra.mxu0 %v121
    %521 = vmatpush.bf16.msra.mxu0 %v120
    %522 = vmatpush.bf16.msra.mxu0 %v119
    %523 = vmatmul.bf16.gmra.mxu0 %v511
    %v524 = vpop.f32.mrf.mxu0
    %v525 = vadd.f32 0.0, %v524
    %v526 = vpop.f32.mrf.mxu0
    %527 = vdwg.mxu0
    %v528 = vadd.f32 %v514, %v525
    %v529 = vtanh.pop %v528
    %v530 = vpack.c.bf16 %v529, %v529
    %531 = vst [vmem:[#allocation2 + $0x54] sm:$0xf] %v530
    %s532 = scalar_lea.vmem [#allocation3], 176
    %v533 = vld [vmem:[%s532] sm:$0xff]
    %534 = vmatpush.bf16.msra.mxu0 %v126
    %535 = vmatpush.bf16.msra.mxu0 %v125
    %536 = vmatpush.bf16.msra.mxu0 %v124
    %537 = vmatpush.bf16.msra.mxu0 %v123
    %538 = vmatpush.bf16.msra.mxu0 %v122
    %539 = vmatpush.bf16.msra.mxu0 %v121
    %540 = vmatpush.bf16.msra.mxu0 %v120
    %541 = vmatpush.bf16.msra.mxu0 %v119
    %542 = vmatmul.bf16.gmra.mxu0 %v530
    %v543 = vpop.f32.mrf.mxu0
    %v544 = vadd.f32 0.0, %v543
    %v545 = vpop.f32.mrf.mxu0
    %546 = vdwg.mxu0
    %v547 = vadd.f32 %v533, %v544
    %v548 = vtanh.pop %v547
    %v549 = vpack.c.bf16 %v548, %v548
    %550 = vst [vmem:[#allocation2 + $0x58] sm:$0xf] %v549
    %s551 = scalar_lea.vmem [#allocation3], 184
    %v552 = vld [vmem:[%s551] sm:$0xff]
    %553 = vmatpush.bf16.msra.mxu0 %v126
    %554 = vmatpush.bf16.msra.mxu0 %v125
    %555 = vmatpush.bf16.msra.mxu0 %v124
    %556 = vmatpush.bf16.msra.mxu0 %v123
    %557 = vmatpush.bf16.msra.mxu0 %v122
    %558 = vmatpush.bf16.msra.mxu0 %v121
    %559 = vmatpush.bf16.msra.mxu0 %v120
    %560 = vmatpush.bf16.msra.mxu0 %v119
    %561 = vmatmul.bf16.gmra.mxu0 %v549
    %v562 = vpop.f32.mrf.mxu0
    %v563 = vadd.f32 0.0, %v562
    %v564 = vpop.f32.mrf.mxu0
    %565 = vdwg.mxu0
    %v566 = vadd.f32 %v552, %v563
    %v567 = vtanh.pop %v566
    %v568 = vpack.c.bf16 %v567, %v567
    %569 = vst [vmem:[#allocation2 + $0x5c] sm:$0xf] %v568
    %s570 = scalar_lea.vmem [#allocation3], 192
    %v571 = vld [vmem:[%s570] sm:$0xff]
    %572 = vmatpush.bf16.msra.mxu0 %v126
    %573 = vmatpush.bf16.msra.mxu0 %v125
    %574 = vmatpush.bf16.msra.mxu0 %v124
    %575 = vmatpush.bf16.msra.mxu0 %v123
    %576 = vmatpush.bf16.msra.mxu0 %v122
    %577 = vmatpush.bf16.msra.mxu0 %v121
    %578 = vmatpush.bf16.msra.mxu0 %v120
    %579 = vmatpush.bf16.msra.mxu0 %v119
    %580 = vmatmul.bf16.gmra.mxu0 %v568
    %v581 = vpop.f32.mrf.mxu0
    %v582 = vadd.f32 0.0, %v581
    %v583 = vpop.f32.mrf.mxu0
    %584 = vdwg.mxu0
    %v585 = vadd.f32 %v571, %v582
    %v586 = vtanh.pop %v585
    %v587 = vpack.c.bf16 %v586, %v586
    %588 = vst [vmem:[#allocation2 + $0x60] sm:$0xf] %v587
    %s589 = scalar_lea.vmem [#allocation3], 200
    %v590 = vld [vmem:[%s589] sm:$0xff]
    %591 = vmatpush.bf16.msra.mxu0 %v126
    %592 = vmatpush.bf16.msra.mxu0 %v125
    %593 = vmatpush.bf16.msra.mxu0 %v124
    %594 = vmatpush.bf16.msra.mxu0 %v123
    %595 = vmatpush.bf16.msra.mxu0 %v122
    %596 = vmatpush.bf16.msra.mxu0 %v121
    %597 = vmatpush.bf16.msra.mxu0 %v120
    %598 = vmatpush.bf16.msra.mxu0 %v119
    %599 = vmatmul.bf16.gmra.mxu0 %v587
    %v600 = vpop.f32.mrf.mxu0
    %v601 = vadd.f32 0.0, %v600
    %v602 = vpop.f32.mrf.mxu0
    %603 = vdwg.mxu0
    %v604 = vadd.f32 %v590, %v601
    %v605 = vtanh.pop %v604
    %v606 = vpack.c.bf16 %v605, %v605
    %607 = vst [vmem:[#allocation2 + $0x64] sm:$0xf] %v606
    %s608 = scalar_lea.vmem [#allocation3], 208
    %v609 = vld [vmem:[%s608] sm:$0xff]
    %610 = vmatpush.bf16.msra.mxu0 %v126
    %611 = vmatpush.bf16.msra.mxu0 %v125
    %612 = vmatpush.bf16.msra.mxu0 %v124
    %613 = vmatpush.bf16.msra.mxu0 %v123
    %614 = vmatpush.bf16.msra.mxu0 %v122
    %615 = vmatpush.bf16.msra.mxu0 %v121
    %616 = vmatpush.bf16.msra.mxu0 %v120
    %617 = vmatpush.bf16.msra.mxu0 %v119
    %618 = vmatmul.bf16.gmra.mxu0 %v606
    %v619 = vpop.f32.mrf.mxu0
    %v620 = vadd.f32 0.0, %v619
    %v621 = vpop.f32.mrf.mxu0
    %622 = vdwg.mxu0
    %v623 = vadd.f32 %v609, %v620
    %v624 = vtanh.pop %v623
    %v625 = vpack.c.bf16 %v624, %v624
    %626 = vst [vmem:[#allocation2 + $0x68] sm:$0xf] %v625
    %s627 = scalar_lea.vmem [#allocation3], 216
    %v628 = vld [vmem:[%s627] sm:$0xff]
    %629 = vmatpush.bf16.msra.mxu0 %v126
    %630 = vmatpush.bf16.msra.mxu0 %v125
    %631 = vmatpush.bf16.msra.mxu0 %v124
    %632 = vmatpush.bf16.msra.mxu0 %v123
    %633 = vmatpush.bf16.msra.mxu0 %v122
    %634 = vmatpush.bf16.msra.mxu0 %v121
    %635 = vmatpush.bf16.msra.mxu0 %v120
    %636 = vmatpush.bf16.msra.mxu0 %v119
    %637 = vmatmul.bf16.gmra.mxu0 %v625
    %v638 = vpop.f32.mrf.mxu0
    %v639 = vadd.f32 0.0, %v638
    %v640 = vpop.f32.mrf.mxu0
    %641 = vdwg.mxu0
    %v642 = vadd.f32 %v628, %v639
    %v643 = vtanh.pop %v642
    %v644 = vpack.c.bf16 %v643, %v643
    %645 = vst [vmem:[#allocation2 + $0x6c] sm:$0xf] %v644
    %v646 = vld [vmem:[%s3] sm:$0x1]
    %v648 = vperm.slane %v646, 0
    %v650 = vld [vmem:[#allocation2] sm:$0xff]
    %v651 = vld [vmem:[#allocation2 + $0x8] sm:$0xff]
    %v652 = vld [vmem:[#allocation2 + $0x10] sm:$0xff]
    %v653 = vld [vmem:[#allocation2 + $0x18] sm:$0xff]
    %v654 = vld [vmem:[#allocation2 + $0x20] sm:$0xff]
    %v655 = vld [vmem:[#allocation2 + $0x28] sm:$0xff]
    %v656 = vld [vmem:[#allocation2 + $0x30] sm:$0xff]
    %v657 = vld [vmem:[#allocation2 + $0x38] sm:$0xff]
    %v658 = vld [vmem:[#allocation2 + $0x40] sm:$0xff]
    %v659 = vld [vmem:[#allocation2 + $0x48] sm:$0xff]
    %v660 = vld [vmem:[#allocation2 + $0x50] sm:$0xff]
    %v661 = vld [vmem:[#allocation2 + $0x58] sm:$0xff]
    %v662 = vld [vmem:[#allocation2 + $0x60] sm:$0xff]
    %v663 = vld [vmem:[#allocation2 + $0x68] sm:$0xff]
    %v664 = vld [vmem:[#allocation8] sm:$0xf]
    %v665 = vld [vmem:[#allocation8 + $0x4] sm:$0xf]
    %v666 = vld [vmem:[#allocation8 + $0x8] sm:$0xf]
    %v667 = vld [vmem:[#allocation8 + $0xc] sm:$0xf]
    %v668 = vld [vmem:[#allocation8 + $0x10] sm:$0xf]
    %v669 = vld [vmem:[#allocation8 + $0x14] sm:$0xf]
    %v670 = vld [vmem:[#allocation8 + $0x18] sm:$0xf]
    %v671 = vld [vmem:[#allocation8 + $0x1c] sm:$0xf]
    %v672 = vld [vmem:[#allocation8 + $0x20] sm:$0xf]
    %v673 = vld [vmem:[#allocation8 + $0x24] sm:$0xf]
    %v674 = vld [vmem:[#allocation8 + $0x28] sm:$0xf]
    %v675 = vld [vmem:[#allocation8 + $0x2c] sm:$0xf]
    %v676 = vld [vmem:[#allocation8 + $0x30] sm:$0xf]
    %v677 = vld [vmem:[#allocation8 + $0x34] sm:$0xf]
    %v678 = vld [vmem:[#allocation8 + $0x38] sm:$0xf]
    %v679 = vld [vmem:[#allocation8 + $0x3c] sm:$0xf]
    %v680 = vld [vmem:[#allocation8 + $0x40] sm:$0xf]
    %v681 = vld [vmem:[#allocation8 + $0x44] sm:$0xf]
    %v682 = vld [vmem:[#allocation8 + $0x48] sm:$0xf]
    %v683 = vld [vmem:[#allocation8 + $0x4c] sm:$0xf]
    %v684 = vld [vmem:[#allocation8 + $0x50] sm:$0xf]
    %v685 = vld [vmem:[#allocation8 + $0x54] sm:$0xf]
    %v686 = vld [vmem:[#allocation8 + $0x58] sm:$0xf]
    %v687 = vld [vmem:[#allocation8 + $0x5c] sm:$0xf]
    %v688 = vld [vmem:[#allocation8 + $0x60] sm:$0xf]
    %v689 = vld [vmem:[#allocation8 + $0x64] sm:$0xf]
    %v690 = vld [vmem:[#allocation8 + $0x68] sm:$0xf]
    %v691 = vld [vmem:[#allocation8 + $0x6c] sm:$0xf]
    %v692 = vld [vmem:[#allocation8 + $0x70] sm:$0xf]
    %v693 = vld [vmem:[#allocation8 + $0x74] sm:$0xf]
    %v694 = vld [vmem:[#allocation8 + $0x78] sm:$0xf]
    %v695 = vld [vmem:[#allocation8 + $0x7c] sm:$0xf]
    %v696 = vld [vmem:[#allocation8 + $0x80] sm:$0xf]
    %v697 = vld [vmem:[#allocation8 + $0x84] sm:$0xf]
    %v698 = vld [vmem:[#allocation8 + $0x88] sm:$0xf]
    %v699 = vld [vmem:[#allocation8 + $0x8c] sm:$0xf]
    %v700 = vld [vmem:[#allocation8 + $0x90] sm:$0xf]
    %v701 = vld [vmem:[#allocation8 + $0x94] sm:$0xf]
    %v702 = vld [vmem:[#allocation8 + $0x98] sm:$0xf]
    %v703 = vld [vmem:[#allocation8 + $0x9c] sm:$0xf]
    %v704 = vld [vmem:[#allocation8 + $0xa0] sm:$0xf]
    %v705 = vld [vmem:[#allocation8 + $0xa4] sm:$0xf]
    %v706 = vld [vmem:[#allocation8 + $0xa8] sm:$0xf]
    %v707 = vld [vmem:[#allocation8 + $0xac] sm:$0xf]
    %v708 = vld [vmem:[#allocation8 + $0xb0] sm:$0xf]
    %v709 = vld [vmem:[#allocation8 + $0xb4] sm:$0xf]
    %v710 = vld [vmem:[#allocation8 + $0xb8] sm:$0xf]
    %v711 = vld [vmem:[#allocation8 + $0xbc] sm:$0xf]
    %v712 = vld [vmem:[#allocation8 + $0xc0] sm:$0xf]
    %v713 = vld [vmem:[#allocation8 + $0xc4] sm:$0xf]
    %v714 = vld [vmem:[#allocation8 + $0xc8] sm:$0xf]
    %v715 = vld [vmem:[#allocation8 + $0xcc] sm:$0xf]
    %v716 = vld [vmem:[#allocation8 + $0xd0] sm:$0xf]
    %v717 = vld [vmem:[#allocation8 + $0xd4] sm:$0xf]
    %v718 = vld [vmem:[#allocation8 + $0xd8] sm:$0xf]
    %v719 = vld [vmem:[#allocation8 + $0xdc] sm:$0xf]
    %v720 = vld [vmem:[#allocation8 + $0xe0] sm:$0xf]
    %v721 = vld [vmem:[#allocation8 + $0xe4] sm:$0xf]
    %v722 = vld [vmem:[#allocation8 + $0xe8] sm:$0xf]
    %v723 = vld [vmem:[#allocation8 + $0xec] sm:$0xf]
    %v724 = vld [vmem:[#allocation8 + $0xf0] sm:$0xf]
    %v725 = vld [vmem:[#allocation8 + $0xf4] sm:$0xf]
    %v726 = vld [vmem:[#allocation8 + $0xf8] sm:$0xf]
    %v727 = vld [vmem:[#allocation8 + $0xfc] sm:$0xf]
    %v728 = vld [vmem:[#allocation8 + $0x100] sm:$0xf]
    %v729 = vld [vmem:[#allocation8 + $0x104] sm:$0xf]
    %v730 = vld [vmem:[#allocation8 + $0x108] sm:$0xf]
    %v731 = vld [vmem:[#allocation8 + $0x10c] sm:$0xf]
    %v732 = vld [vmem:[#allocation8 + $0x110] sm:$0xf]
    %v733 = vld [vmem:[#allocation8 + $0x114] sm:$0xf]
    %v734 = vld [vmem:[#allocation8 + $0x118] sm:$0xf]
    %v735 = vld [vmem:[#allocation8 + $0x11c] sm:$0xf]
    %v736 = vld [vmem:[#allocation8 + $0x120] sm:$0xf]
    %v737 = vld [vmem:[#allocation8 + $0x124] sm:$0xf]
    %v738 = vld [vmem:[#allocation8 + $0x128] sm:$0xf]
    %v739 = vld [vmem:[#allocation8 + $0x12c] sm:$0xf]
    %v740 = vld [vmem:[#allocation8 + $0x130] sm:$0xf]
    %v741 = vld [vmem:[#allocation8 + $0x134] sm:$0xf]
    %v742 = vld [vmem:[#allocation8 + $0x138] sm:$0xf]
    %v743 = vld [vmem:[#allocation8 + $0x13c] sm:$0xf]
    %v744 = vld [vmem:[#allocation8 + $0x140] sm:$0xf]
    %v745 = vld [vmem:[#allocation8 + $0x144] sm:$0xf]
    %v746 = vld [vmem:[#allocation8 + $0x148] sm:$0xf]
    %v747 = vld [vmem:[#allocation8 + $0x14c] sm:$0xf]
    %v748 = vld [vmem:[#allocation8 + $0x150] sm:$0xf]
    %v749 = vld [vmem:[#allocation8 + $0x154] sm:$0xf]
    %v750 = vld [vmem:[#allocation8 + $0x158] sm:$0xf]
    %v751 = vld [vmem:[#allocation8 + $0x15c] sm:$0xf]
    %v752 = vld [vmem:[#allocation8 + $0x160] sm:$0xf]
    %v753 = vld [vmem:[#allocation8 + $0x164] sm:$0xf]
    %v754 = vld [vmem:[#allocation8 + $0x168] sm:$0xf]
    %v755 = vld [vmem:[#allocation8 + $0x16c] sm:$0xf]
    %v756 = vld [vmem:[#allocation8 + $0x170] sm:$0xf]
    %v757 = vld [vmem:[#allocation8 + $0x174] sm:$0xf]
    %v758 = vld [vmem:[#allocation8 + $0x178] sm:$0xf]
    %v759 = vld [vmem:[#allocation8 + $0x17c] sm:$0xf]
    %v760 = vld [vmem:[#allocation8 + $0x180] sm:$0xf]
    %v761 = vld [vmem:[#allocation8 + $0x184] sm:$0xf]
    %v762 = vld [vmem:[#allocation8 + $0x188] sm:$0xf]
    %v763 = vld [vmem:[#allocation8 + $0x18c] sm:$0xf]
    %v764 = vld [vmem:[#allocation8 + $0x190] sm:$0xf]
    %v765 = vld [vmem:[#allocation8 + $0x194] sm:$0xf]
    %v766 = vld [vmem:[#allocation8 + $0x198] sm:$0xf]
    %v767 = vld [vmem:[#allocation8 + $0x19c] sm:$0xf]
    %v768 = vld [vmem:[#allocation8 + $0x1a0] sm:$0xf]
    %v769 = vld [vmem:[#allocation8 + $0x1a4] sm:$0xf]
    %v770 = vld [vmem:[#allocation8 + $0x1a8] sm:$0xf]
    %v771 = vld [vmem:[#allocation8 + $0x1ac] sm:$0xf]
    %v772 = vld [vmem:[#allocation8 + $0x1b0] sm:$0xf]
    %v773 = vld [vmem:[#allocation8 + $0x1b4] sm:$0xf]
    %v774 = vld [vmem:[#allocation8 + $0x1b8] sm:$0xf]
    %v775 = vld [vmem:[#allocation8 + $0x1bc] sm:$0xf]
    %v776 = vld [vmem:[#allocation8 + $0x1c0] sm:$0xf]
    %v777 = vld [vmem:[#allocation8 + $0x1c4] sm:$0xf]
    %v778 = vld [vmem:[#allocation8 + $0x1c8] sm:$0xf]
    %v779 = vld [vmem:[#allocation8 + $0x1cc] sm:$0xf]
    %v780 = vld [vmem:[#allocation8 + $0x1d0] sm:$0xf]
    %v781 = vld [vmem:[#allocation8 + $0x1d4] sm:$0xf]
    %v782 = vld [vmem:[#allocation8 + $0x1d8] sm:$0xf]
    %v783 = vld [vmem:[#allocation8 + $0x1dc] sm:$0xf]
    %v784 = vld [vmem:[#allocation8 + $0x1e0] sm:$0xf]
    %v785 = vld [vmem:[#allocation8 + $0x1e4] sm:$0xf]
    %v786 = vld [vmem:[#allocation8 + $0x1e8] sm:$0xf]
    %v787 = vld [vmem:[#allocation8 + $0x1ec] sm:$0xf]
    %v788 = vld [vmem:[#allocation8 + $0x1f0] sm:$0xf]
    %v789 = vld [vmem:[#allocation8 + $0x1f4] sm:$0xf]
    %v790 = vld [vmem:[#allocation8 + $0x1f8] sm:$0xf]
    %v791 = vld [vmem:[#allocation8 + $0x1fc] sm:$0xf]
    %v792 = vld [vmem:[#allocation8 + $0x200] sm:$0xf]
    %v793 = vld [vmem:[#allocation8 + $0x204] sm:$0xf]
    %v794 = vld [vmem:[#allocation8 + $0x208] sm:$0xf]
    %v795 = vld [vmem:[#allocation8 + $0x20c] sm:$0xf]
    %v796 = vld [vmem:[#allocation8 + $0x210] sm:$0xf]
    %v797 = vld [vmem:[#allocation8 + $0x214] sm:$0xf]
    %v798 = vld [vmem:[#allocation8 + $0x218] sm:$0xf]
    %v799 = vld [vmem:[#allocation8 + $0x21c] sm:$0xf]
    %v800 = vld [vmem:[#allocation8 + $0x220] sm:$0xf]
    %v801 = vld [vmem:[#allocation8 + $0x224] sm:$0xf]
    %v802 = vld [vmem:[#allocation8 + $0x228] sm:$0xf]
    %v803 = vld [vmem:[#allocation8 + $0x22c] sm:$0xf]
    %v804 = vld [vmem:[#allocation8 + $0x230] sm:$0xf]
    %v805 = vld [vmem:[#allocation8 + $0x234] sm:$0xf]
    %v806 = vld [vmem:[#allocation8 + $0x238] sm:$0xf]
    %v807 = vld [vmem:[#allocation8 + $0x23c] sm:$0xf]
    %v808 = vld [vmem:[#allocation8 + $0x240] sm:$0xf]
    %v809 = vld [vmem:[#allocation8 + $0x244] sm:$0xf]
    %v810 = vld [vmem:[#allocation8 + $0x248] sm:$0xf]
    %v811 = vld [vmem:[#allocation8 + $0x24c] sm:$0xf]
    %v812 = vld [vmem:[#allocation8 + $0x250] sm:$0xf]
    %v813 = vld [vmem:[#allocation8 + $0x254] sm:$0xf]
    %v814 = vld [vmem:[#allocation8 + $0x258] sm:$0xf]
    %v815 = vld [vmem:[#allocation8 + $0x25c] sm:$0xf]
    %v816 = vld [vmem:[#allocation8 + $0x260] sm:$0xf]
    %v817 = vld [vmem:[#allocation8 + $0x264] sm:$0xf]
    %v818 = vld [vmem:[#allocation8 + $0x268] sm:$0xf]
    %v819 = vld [vmem:[#allocation8 + $0x26c] sm:$0xf]
    %v820 = vld [vmem:[#allocation8 + $0x270] sm:$0xf]
    %v821 = vld [vmem:[#allocation8 + $0x274] sm:$0xf]
    %v822 = vld [vmem:[#allocation8 + $0x278] sm:$0xf]
    %v823 = vld [vmem:[#allocation8 + $0x27c] sm:$0xf]
    %v824 = vld [vmem:[#allocation8 + $0x280] sm:$0xf]
    %v825 = vld [vmem:[#allocation8 + $0x284] sm:$0xf]
    %v826 = vld [vmem:[#allocation8 + $0x288] sm:$0xf]
    %v827 = vld [vmem:[#allocation8 + $0x28c] sm:$0xf]
    %v828 = vld [vmem:[#allocation8 + $0x290] sm:$0xf]
    %v829 = vld [vmem:[#allocation8 + $0x294] sm:$0xf]
    %v830 = vld [vmem:[#allocation8 + $0x298] sm:$0xf]
    %v831 = vld [vmem:[#allocation8 + $0x29c] sm:$0xf]
    %v832 = vld [vmem:[#allocation8 + $0x2a0] sm:$0xf]
    %v833 = vld [vmem:[#allocation8 + $0x2a4] sm:$0xf]
    %v834 = vld [vmem:[#allocation8 + $0x2a8] sm:$0xf]
    %v835 = vld [vmem:[#allocation8 + $0x2ac] sm:$0xf]
    %v836 = vld [vmem:[#allocation8 + $0x2b0] sm:$0xf]
    %v837 = vld [vmem:[#allocation8 + $0x2b4] sm:$0xf]
    %v838 = vld [vmem:[#allocation8 + $0x2b8] sm:$0xf]
    %v839 = vld [vmem:[#allocation8 + $0x2bc] sm:$0xf]
    %v840 = vld [vmem:[#allocation8 + $0x2c0] sm:$0xf]
    %v841 = vld [vmem:[#allocation8 + $0x2c4] sm:$0xf]
    %v842 = vld [vmem:[#allocation8 + $0x2c8] sm:$0xf]
    %v843 = vld [vmem:[#allocation8 + $0x2cc] sm:$0xf]
    %v844 = vld [vmem:[#allocation8 + $0x2d0] sm:$0xf]
    %v845 = vld [vmem:[#allocation8 + $0x2d4] sm:$0xf]
    %v846 = vld [vmem:[#allocation8 + $0x2d8] sm:$0xf]
    %v847 = vld [vmem:[#allocation8 + $0x2dc] sm:$0xf]
    %v848 = vld [vmem:[#allocation8 + $0x2e0] sm:$0xf]
    %v849 = vld [vmem:[#allocation8 + $0x2e4] sm:$0xf]
    %v850 = vld [vmem:[#allocation8 + $0x2e8] sm:$0xf]
    %v851 = vld [vmem:[#allocation8 + $0x2ec] sm:$0xf]
    %v852 = vld [vmem:[#allocation8 + $0x2f0] sm:$0xf]
    %v853 = vld [vmem:[#allocation8 + $0x2f4] sm:$0xf]
    %v854 = vld [vmem:[#allocation8 + $0x2f8] sm:$0xf]
    %v855 = vld [vmem:[#allocation8 + $0x2fc] sm:$0xf]
    %v856 = vld [vmem:[#allocation8 + $0x300] sm:$0xf]
    %v857 = vld [vmem:[#allocation8 + $0x304] sm:$0xf]
    %v858 = vld [vmem:[#allocation8 + $0x308] sm:$0xf]
    %v859 = vld [vmem:[#allocation8 + $0x30c] sm:$0xf]
    %v860 = vld [vmem:[#allocation8 + $0x310] sm:$0xf]
    %v861 = vld [vmem:[#allocation8 + $0x314] sm:$0xf]
    %v862 = vld [vmem:[#allocation8 + $0x318] sm:$0xf]
    %v863 = vld [vmem:[#allocation8 + $0x31c] sm:$0xf]
    %v864 = vld [vmem:[#allocation8 + $0x320] sm:$0xf]
    %v865 = vld [vmem:[#allocation8 + $0x324] sm:$0xf]
    %v866 = vld [vmem:[#allocation8 + $0x328] sm:$0xf]
    %v867 = vld [vmem:[#allocation8 + $0x32c] sm:$0xf]
    %v868 = vld [vmem:[#allocation8 + $0x330] sm:$0xf]
    %v869 = vld [vmem:[#allocation8 + $0x334] sm:$0xf]
    %v870 = vld [vmem:[#allocation8 + $0x338] sm:$0xf]
    %v871 = vld [vmem:[#allocation8 + $0x33c] sm:$0xf]
    %v872 = vld [vmem:[#allocation8 + $0x340] sm:$0xf]
    %v873 = vld [vmem:[#allocation8 + $0x344] sm:$0xf]
    %v874 = vld [vmem:[#allocation8 + $0x348] sm:$0xf]
    %v875 = vld [vmem:[#allocation8 + $0x34c] sm:$0xf]
    %v876 = vld [vmem:[#allocation8 + $0x350] sm:$0xf]
    %v877 = vld [vmem:[#allocation8 + $0x354] sm:$0xf]
    %v878 = vld [vmem:[#allocation8 + $0x358] sm:$0xf]
    %v879 = vld [vmem:[#allocation8 + $0x35c] sm:$0xf]
    %v880 = vld [vmem:[#allocation8 + $0x360] sm:$0xf]
    %v881 = vld [vmem:[#allocation8 + $0x364] sm:$0xf]
    %v882 = vld [vmem:[#allocation8 + $0x368] sm:$0xf]
    %v883 = vld [vmem:[#allocation8 + $0x36c] sm:$0xf]
    %v884 = vld [vmem:[#allocation8 + $0x370] sm:$0xf]
    %v885 = vld [vmem:[#allocation8 + $0x374] sm:$0xf]
    %v886 = vld [vmem:[#allocation8 + $0x378] sm:$0xf]
    %v887 = vld [vmem:[#allocation8 + $0x37c] sm:$0xf]
    %v888 = vld [vmem:[#allocation8 + $0x380] sm:$0xf]
    %v889 = vld [vmem:[#allocation8 + $0x384] sm:$0xf]
    %v890 = vld [vmem:[#allocation8 + $0x388] sm:$0xf]
    %v891 = vld [vmem:[#allocation8 + $0x38c] sm:$0xf]
    %v892 = vld [vmem:[#allocation8 + $0x390] sm:$0xf]
    %v893 = vld [vmem:[#allocation8 + $0x394] sm:$0xf]
    %v894 = vld [vmem:[#allocation8 + $0x398] sm:$0xf]
    %v895 = vld [vmem:[#allocation8 + $0x39c] sm:$0xf]
    %v896 = vld [vmem:[#allocation8 + $0x3a0] sm:$0xf]
    %v897 = vld [vmem:[#allocation8 + $0x3a4] sm:$0xf]
    %v898 = vld [vmem:[#allocation8 + $0x3a8] sm:$0xf]
    %v899 = vld [vmem:[#allocation8 + $0x3ac] sm:$0xf]
    %v900 = vld [vmem:[#allocation8 + $0x3b0] sm:$0xf]
    %v901 = vld [vmem:[#allocation8 + $0x3b4] sm:$0xf]
    %v902 = vld [vmem:[#allocation8 + $0x3b8] sm:$0xf]
    %v903 = vld [vmem:[#allocation8 + $0x3bc] sm:$0xf]
    %v904 = vld [vmem:[#allocation8 + $0x3c0] sm:$0xf]
    %v905 = vld [vmem:[#allocation8 + $0x3c4] sm:$0xf]
    %v906 = vld [vmem:[#allocation8 + $0x3c8] sm:$0xf]
    %v907 = vld [vmem:[#allocation8 + $0x3cc] sm:$0xf]
    %v908 = vld [vmem:[#allocation8 + $0x3d0] sm:$0xf]
    %v909 = vld [vmem:[#allocation8 + $0x3d4] sm:$0xf]
    %v910 = vld [vmem:[#allocation8 + $0x3d8] sm:$0xf]
    %v911 = vld [vmem:[#allocation8 + $0x3dc] sm:$0xf]
    %v912 = vld [vmem:[#allocation8 + $0x3e0] sm:$0xf]
    %v913 = vld [vmem:[#allocation8 + $0x3e4] sm:$0xf]
    %v914 = vld [vmem:[#allocation8 + $0x3e8] sm:$0xf]
    %v915 = vld [vmem:[#allocation8 + $0x3ec] sm:$0xf]
    %v916 = vld [vmem:[#allocation8 + $0x3f0] sm:$0xf]
    %v917 = vld [vmem:[#allocation8 + $0x3f4] sm:$0xf]
    %v918 = vld [vmem:[#allocation8 + $0x3f8] sm:$0xf]
    %v919 = vld [vmem:[#allocation8 + $0x3fc] sm:$0xf]
    %v920 = vld [vmem:[#allocation8 + $0x400] sm:$0xf]
    %v921 = vld [vmem:[#allocation8 + $0x404] sm:$0xf]
    %v922 = vld [vmem:[#allocation8 + $0x408] sm:$0xf]
    %v923 = vld [vmem:[#allocation8 + $0x40c] sm:$0xf]
    %v924 = vld [vmem:[#allocation8 + $0x410] sm:$0xf]
    %v925 = vld [vmem:[#allocation8 + $0x414] sm:$0xf]
    %v926 = vld [vmem:[#allocation8 + $0x418] sm:$0xf]
    %v927 = vld [vmem:[#allocation8 + $0x41c] sm:$0xf]
    %v928 = vld [vmem:[#allocation8 + $0x420] sm:$0xf]
    %v929 = vld [vmem:[#allocation8 + $0x424] sm:$0xf]
    %v930 = vld [vmem:[#allocation8 + $0x428] sm:$0xf]
    %v931 = vld [vmem:[#allocation8 + $0x42c] sm:$0xf]
    %v932 = vld [vmem:[#allocation8 + $0x430] sm:$0xf]
    %v933 = vld [vmem:[#allocation8 + $0x434] sm:$0xf]
    %v934 = vld [vmem:[#allocation8 + $0x438] sm:$0xf]
    %v935 = vld [vmem:[#allocation8 + $0x43c] sm:$0xf]
    %v936 = vld [vmem:[#allocation8 + $0x440] sm:$0xf]
    %v937 = vld [vmem:[#allocation8 + $0x444] sm:$0xf]
    %v938 = vld [vmem:[#allocation8 + $0x448] sm:$0xf]
    %v939 = vld [vmem:[#allocation8 + $0x44c] sm:$0xf]
    %v940 = vld [vmem:[#allocation8 + $0x450] sm:$0xf]
    %v941 = vld [vmem:[#allocation8 + $0x454] sm:$0xf]
    %v942 = vld [vmem:[#allocation8 + $0x458] sm:$0xf]
    %v943 = vld [vmem:[#allocation8 + $0x45c] sm:$0xf]
    %v944 = vld [vmem:[#allocation8 + $0x460] sm:$0xf]
    %v945 = vld [vmem:[#allocation8 + $0x464] sm:$0xf]
    %v946 = vld [vmem:[#allocation8 + $0x468] sm:$0xf]
    %v947 = vld [vmem:[#allocation8 + $0x46c] sm:$0xf]
    %v948 = vld [vmem:[#allocation8 + $0x470] sm:$0xf]
    %v949 = vld [vmem:[#allocation8 + $0x474] sm:$0xf]
    %v950 = vld [vmem:[#allocation8 + $0x478] sm:$0xf]
    %v951 = vld [vmem:[#allocation8 + $0x47c] sm:$0xf]
    %v952 = vld [vmem:[#allocation8 + $0x480] sm:$0xf]
    %v953 = vld [vmem:[#allocation8 + $0x484] sm:$0xf]
    %v954 = vld [vmem:[#allocation8 + $0x488] sm:$0xf]
    %v955 = vld [vmem:[#allocation8 + $0x48c] sm:$0xf]
    %v956 = vld [vmem:[#allocation8 + $0x490] sm:$0xf]
    %v957 = vld [vmem:[#allocation8 + $0x494] sm:$0xf]
    %v958 = vld [vmem:[#allocation8 + $0x498] sm:$0xf]
    %v959 = vld [vmem:[#allocation8 + $0x49c] sm:$0xf]
    %v960 = vld [vmem:[#allocation8 + $0x4a0] sm:$0xf]
    %v961 = vld [vmem:[#allocation8 + $0x4a4] sm:$0xf]
    %v962 = vld [vmem:[#allocation8 + $0x4a8] sm:$0xf]
    %v963 = vld [vmem:[#allocation8 + $0x4ac] sm:$0xf]
    %v964 = vld [vmem:[#allocation8 + $0x4b0] sm:$0xf]
    %v965 = vld [vmem:[#allocation8 + $0x4b4] sm:$0xf]
    %v966 = vld [vmem:[#allocation8 + $0x4b8] sm:$0xf]
    %v967 = vld [vmem:[#allocation8 + $0x4bc] sm:$0xf]
    %v968 = vld [vmem:[#allocation8 + $0x4c0] sm:$0xf]
    %v969 = vld [vmem:[#allocation8 + $0x4c4] sm:$0xf]
    %v970 = vld [vmem:[#allocation8 + $0x4c8] sm:$0xf]
    %v971 = vld [vmem:[#allocation8 + $0x4cc] sm:$0xf]
    %v972 = vld [vmem:[#allocation8 + $0x4d0] sm:$0xf]
    %v973 = vld [vmem:[#allocation8 + $0x4d4] sm:$0xf]
    %v974 = vld [vmem:[#allocation8 + $0x4d8] sm:$0xf]
    %v975 = vld [vmem:[#allocation8 + $0x4dc] sm:$0xf]
    %v976 = vld [vmem:[#allocation8 + $0x4e0] sm:$0xf]
    %v977 = vld [vmem:[#allocation8 + $0x4e4] sm:$0xf]
    %v978 = vld [vmem:[#allocation8 + $0x4e8] sm:$0xf]
    %v979 = vld [vmem:[#allocation8 + $0x4ec] sm:$0xf]
    %v980 = vld [vmem:[#allocation8 + $0x4f0] sm:$0xf]
    %v981 = vld [vmem:[#allocation8 + $0x4f4] sm:$0xf]
    %v982 = vld [vmem:[#allocation8 + $0x4f8] sm:$0xf]
    %v983 = vld [vmem:[#allocation8 + $0x4fc] sm:$0xf]
    %v984 = vld [vmem:[#allocation8 + $0x500] sm:$0xf]
    %v985 = vld [vmem:[#allocation8 + $0x504] sm:$0xf]
    %v986 = vld [vmem:[#allocation8 + $0x508] sm:$0xf]
    %v987 = vld [vmem:[#allocation8 + $0x50c] sm:$0xf]
    %v988 = vld [vmem:[#allocation8 + $0x510] sm:$0xf]
    %v989 = vld [vmem:[#allocation8 + $0x514] sm:$0xf]
    %v990 = vld [vmem:[#allocation8 + $0x518] sm:$0xf]
    %v991 = vld [vmem:[#allocation8 + $0x51c] sm:$0xf]
    %v992 = vld [vmem:[#allocation8 + $0x520] sm:$0xf]
    %v993 = vld [vmem:[#allocation8 + $0x524] sm:$0xf]
    %v994 = vld [vmem:[#allocation8 + $0x528] sm:$0xf]
    %v995 = vld [vmem:[#allocation8 + $0x52c] sm:$0xf]
    %v996 = vld [vmem:[#allocation8 + $0x530] sm:$0xf]
    %v997 = vld [vmem:[#allocation8 + $0x534] sm:$0xf]
    %v998 = vld [vmem:[#allocation8 + $0x538] sm:$0xf]
    %v999 = vld [vmem:[#allocation8 + $0x53c] sm:$0xf]
    %v1000 = vld [vmem:[#allocation8 + $0x540] sm:$0xf]
    %v1001 = vld [vmem:[#allocation8 + $0x544] sm:$0xf]
    %v1002 = vld [vmem:[#allocation8 + $0x548] sm:$0xf]
    %v1003 = vld [vmem:[#allocation8 + $0x54c] sm:$0xf]
    %v1004 = vld [vmem:[#allocation8 + $0x550] sm:$0xf]
    %v1005 = vld [vmem:[#allocation8 + $0x554] sm:$0xf]
    %v1006 = vld [vmem:[#allocation8 + $0x558] sm:$0xf]
    %v1007 = vld [vmem:[#allocation8 + $0x55c] sm:$0xf]
    %v1008 = vld [vmem:[#allocation8 + $0x560] sm:$0xf]
    %v1009 = vld [vmem:[#allocation8 + $0x564] sm:$0xf]
    %v1010 = vld [vmem:[#allocation8 + $0x568] sm:$0xf]
    %v1011 = vld [vmem:[#allocation8 + $0x56c] sm:$0xf]
    %v1012 = vld [vmem:[#allocation8 + $0x570] sm:$0xf]
    %v1013 = vld [vmem:[#allocation8 + $0x574] sm:$0xf]
    %v1014 = vld [vmem:[#allocation8 + $0x578] sm:$0xf]
    %v1015 = vld [vmem:[#allocation8 + $0x57c] sm:$0xf]
    %v1016 = vld [vmem:[#allocation8 + $0x580] sm:$0xf]
    %v1017 = vld [vmem:[#allocation8 + $0x584] sm:$0xf]
    %v1018 = vld [vmem:[#allocation8 + $0x588] sm:$0xf]
    %v1019 = vld [vmem:[#allocation8 + $0x58c] sm:$0xf]
    %v1020 = vld [vmem:[#allocation8 + $0x590] sm:$0xf]
    %v1021 = vld [vmem:[#allocation8 + $0x594] sm:$0xf]
    %v1022 = vld [vmem:[#allocation8 + $0x598] sm:$0xf]
    %v1023 = vld [vmem:[#allocation8 + $0x59c] sm:$0xf]
    %v1024 = vld [vmem:[#allocation8 + $0x5a0] sm:$0xf]
    %v1025 = vld [vmem:[#allocation8 + $0x5a4] sm:$0xf]
    %v1026 = vld [vmem:[#allocation8 + $0x5a8] sm:$0xf]
    %v1027 = vld [vmem:[#allocation8 + $0x5ac] sm:$0xf]
    %v1028 = vld [vmem:[#allocation8 + $0x5b0] sm:$0xf]
    %v1029 = vld [vmem:[#allocation8 + $0x5b4] sm:$0xf]
    %v1030 = vld [vmem:[#allocation8 + $0x5b8] sm:$0xf]
    %v1031 = vld [vmem:[#allocation8 + $0x5bc] sm:$0xf]
    %v1032 = vld [vmem:[#allocation8 + $0x5c0] sm:$0xf]
    %v1033 = vld [vmem:[#allocation8 + $0x5c4] sm:$0xf]
    %v1034 = vld [vmem:[#allocation8 + $0x5c8] sm:$0xf]
    %v1035 = vld [vmem:[#allocation8 + $0x5cc] sm:$0xf]
    %v1036 = vld [vmem:[#allocation8 + $0x5d0] sm:$0xf]
    %v1037 = vld [vmem:[#allocation8 + $0x5d4] sm:$0xf]
    %v1038 = vld [vmem:[#allocation8 + $0x5d8] sm:$0xf]
    %v1039 = vld [vmem:[#allocation8 + $0x5dc] sm:$0xf]
    %v1040 = vld [vmem:[#allocation8 + $0x5e0] sm:$0xf]
    %v1041 = vld [vmem:[#allocation8 + $0x5e4] sm:$0xf]
    %v1042 = vld [vmem:[#allocation8 + $0x5e8] sm:$0xf]
    %v1043 = vld [vmem:[#allocation8 + $0x5ec] sm:$0xf]
    %v1044 = vld [vmem:[#allocation8 + $0x5f0] sm:$0xf]
    %v1045 = vld [vmem:[#allocation8 + $0x5f4] sm:$0xf]
    %v1046 = vld [vmem:[#allocation8 + $0x5f8] sm:$0xf]
    %v1047 = vld [vmem:[#allocation8 + $0x5fc] sm:$0xf]
    %v1048 = vld [vmem:[#allocation8 + $0x600] sm:$0xf]
    %v1049 = vld [vmem:[#allocation8 + $0x604] sm:$0xf]
    %v1050 = vld [vmem:[#allocation8 + $0x608] sm:$0xf]
    %v1051 = vld [vmem:[#allocation8 + $0x60c] sm:$0xf]
    %v1052 = vld [vmem:[#allocation8 + $0x610] sm:$0xf]
    %v1053 = vld [vmem:[#allocation8 + $0x614] sm:$0xf]
    %v1054 = vld [vmem:[#allocation8 + $0x618] sm:$0xf]
    %v1055 = vld [vmem:[#allocation8 + $0x61c] sm:$0xf]
    %v1056 = vld [vmem:[#allocation8 + $0x620] sm:$0xf]
    %v1057 = vld [vmem:[#allocation8 + $0x624] sm:$0xf]
    %v1058 = vld [vmem:[#allocation8 + $0x628] sm:$0xf]
    %v1059 = vld [vmem:[#allocation8 + $0x62c] sm:$0xf]
    %v1060 = vld [vmem:[#allocation8 + $0x630] sm:$0xf]
    %v1061 = vld [vmem:[#allocation8 + $0x634] sm:$0xf]
    %v1062 = vld [vmem:[#allocation8 + $0x638] sm:$0xf]
    %v1063 = vld [vmem:[#allocation8 + $0x63c] sm:$0xf]
    %v1064 = vld [vmem:[#allocation8 + $0x640] sm:$0xf]
    %v1065 = vld [vmem:[#allocation8 + $0x644] sm:$0xf]
    %v1066 = vld [vmem:[#allocation8 + $0x648] sm:$0xf]
    %v1067 = vld [vmem:[#allocation8 + $0x64c] sm:$0xf]
    %v1068 = vld [vmem:[#allocation8 + $0x650] sm:$0xf]
    %v1069 = vld [vmem:[#allocation8 + $0x654] sm:$0xf]
    %v1070 = vld [vmem:[#allocation8 + $0x658] sm:$0xf]
    %v1071 = vld [vmem:[#allocation8 + $0x65c] sm:$0xf]
    %v1072 = vld [vmem:[#allocation8 + $0x660] sm:$0xf]
    %v1073 = vld [vmem:[#allocation8 + $0x664] sm:$0xf]
    %v1074 = vld [vmem:[#allocation8 + $0x668] sm:$0xf]
    %v1075 = vld [vmem:[#allocation8 + $0x66c] sm:$0xf]
    %v1076 = vld [vmem:[#allocation8 + $0x670] sm:$0xf]
    %v1077 = vld [vmem:[#allocation8 + $0x674] sm:$0xf]
    %v1078 = vld [vmem:[#allocation8 + $0x678] sm:$0xf]
    %v1079 = vld [vmem:[#allocation8 + $0x67c] sm:$0xf]
    %v1080 = vld [vmem:[#allocation8 + $0x680] sm:$0xf]
    %v1081 = vld [vmem:[#allocation8 + $0x684] sm:$0xf]
    %v1082 = vld [vmem:[#allocation8 + $0x688] sm:$0xf]
    %v1083 = vld [vmem:[#allocation8 + $0x68c] sm:$0xf]
    %v1084 = vld [vmem:[#allocation8 + $0x690] sm:$0xf]
    %v1085 = vld [vmem:[#allocation8 + $0x694] sm:$0xf]
    %v1086 = vld [vmem:[#allocation8 + $0x698] sm:$0xf]
    %v1087 = vld [vmem:[#allocation8 + $0x69c] sm:$0xf]
    %v1088 = vld [vmem:[#allocation8 + $0x6a0] sm:$0xf]
    %v1089 = vld [vmem:[#allocation8 + $0x6a4] sm:$0xf]
    %v1090 = vld [vmem:[#allocation8 + $0x6a8] sm:$0xf]
    %v1091 = vld [vmem:[#allocation8 + $0x6ac] sm:$0xf]
    %v1092 = vld [vmem:[#allocation8 + $0x6b0] sm:$0xf]
    %v1093 = vld [vmem:[#allocation8 + $0x6b4] sm:$0xf]
    %v1094 = vld [vmem:[#allocation8 + $0x6b8] sm:$0xf]
    %v1095 = vld [vmem:[#allocation8 + $0x6bc] sm:$0xf]
    %v1096 = vld [vmem:[#allocation8 + $0x6c0] sm:$0xf]
    %v1097 = vld [vmem:[#allocation8 + $0x6c4] sm:$0xf]
    %v1098 = vld [vmem:[#allocation8 + $0x6c8] sm:$0xf]
    %v1099 = vld [vmem:[#allocation8 + $0x6cc] sm:$0xf]
    %v1100 = vld [vmem:[#allocation8 + $0x6d0] sm:$0xf]
    %v1101 = vld [vmem:[#allocation8 + $0x6d4] sm:$0xf]
    %v1102 = vld [vmem:[#allocation8 + $0x6d8] sm:$0xf]
    %v1103 = vld [vmem:[#allocation8 + $0x6dc] sm:$0xf]
    %v1104 = vld [vmem:[#allocation8 + $0x6e0] sm:$0xf]
    %v1105 = vld [vmem:[#allocation8 + $0x6e4] sm:$0xf]
    %v1106 = vld [vmem:[#allocation8 + $0x6e8] sm:$0xf]
    %v1107 = vld [vmem:[#allocation8 + $0x6ec] sm:$0xf]
    %v1108 = vld [vmem:[#allocation8 + $0x6f0] sm:$0xf]
    %v1109 = vld [vmem:[#allocation8 + $0x6f4] sm:$0xf]
    %v1110 = vld [vmem:[#allocation8 + $0x6f8] sm:$0xf]
    %v1111 = vld [vmem:[#allocation8 + $0x6fc] sm:$0xf]
    %v1126 = vunpack.c.l.b16 %v650
    %v1127 = vunpack.c.h.b16 %v650
    %v1128 = vunpack.c.l.b16 %v651
    %v1129 = vunpack.c.h.b16 %v651
    %v1130 = vunpack.c.l.b16 %v652
    %v1131 = vunpack.c.h.b16 %v652
    %v1132 = vunpack.c.l.b16 %v653
    %v1133 = vunpack.c.h.b16 %v653
    %v1134 = vunpack.c.l.b16 %v654
    %v1135 = vunpack.c.h.b16 %v654
    %v1136 = vunpack.c.l.b16 %v655
    %v1137 = vunpack.c.h.b16 %v655
    %v1138 = vunpack.c.l.b16 %v656
    %v1139 = vunpack.c.h.b16 %v656
    %v1140 = vunpack.c.l.b16 %v657
    %v1141 = vunpack.c.h.b16 %v657
    %v1142 = vunpack.c.l.b16 %v658
    %v1143 = vunpack.c.h.b16 %v658
    %v1144 = vunpack.c.l.b16 %v659
    %v1145 = vunpack.c.h.b16 %v659
    %v1146 = vunpack.c.l.b16 %v660
    %v1147 = vunpack.c.h.b16 %v660
    %v1148 = vunpack.c.l.b16 %v661
    %v1149 = vunpack.c.h.b16 %v661
    %v1150 = vunpack.c.l.b16 %v662
    %v1151 = vunpack.c.h.b16 %v662
    %v1152 = vunpack.c.l.b16 %v663
    %v1153 = vunpack.c.h.b16 %v663
    %v1154 = vpack.c.b16 %v1126, %v1126
    %v1155 = vpack.c.b16 %v1127, %v1127
    %v1156 = vpack.c.b16 %v1128, %v1128
    %v1157 = vpack.c.b16 %v1129, %v1129
    %v1158 = vpack.c.b16 %v1130, %v1130
    %v1159 = vpack.c.b16 %v1131, %v1131
    %v1160 = vpack.c.b16 %v1132, %v1132
    %v1161 = vpack.c.b16 %v1133, %v1133
    %v1162 = vpack.c.b16 %v1134, %v1134
    %v1163 = vpack.c.b16 %v1135, %v1135
    %v1164 = vpack.c.b16 %v1136, %v1136
    %v1165 = vpack.c.b16 %v1137, %v1137
    %v1166 = vpack.c.b16 %v1138, %v1138
    %v1167 = vpack.c.b16 %v1139, %v1139
    %v1168 = vpack.c.b16 %v1140, %v1140
    %v1169 = vpack.c.b16 %v1141, %v1141
    %v1170 = vpack.c.b16 %v1142, %v1142
    %v1171 = vpack.c.b16 %v1143, %v1143
    %v1172 = vpack.c.b16 %v1144, %v1144
    %v1173 = vpack.c.b16 %v1145, %v1145
    %v1174 = vpack.c.b16 %v1146, %v1146
    %v1175 = vpack.c.b16 %v1147, %v1147
    %v1176 = vpack.c.b16 %v1148, %v1148
    %v1177 = vpack.c.b16 %v1149, %v1149
    %v1178 = vpack.c.b16 %v1150, %v1150
    %v1179 = vpack.c.b16 %v1151, %v1151
    %v1180 = vpack.c.b16 %v1152, %v1152
    %v1181 = vpack.c.b16 %v1153, %v1153
    %v1658 = vunpack.c.l.b16 %v664
    %v1659 = vunpack.c.l.b16 %v665
    %v1660 = vunpack.c.l.b16 %v666
    %v1661 = vunpack.c.l.b16 %v667
    %v1662 = vunpack.c.l.b16 %v668
    %v1663 = vunpack.c.l.b16 %v669
    %v1664 = vunpack.c.l.b16 %v670
    %v1665 = vunpack.c.l.b16 %v671
    %v1666 = vunpack.c.l.b16 %v672
    %v1667 = vunpack.c.l.b16 %v673
    %v1668 = vunpack.c.l.b16 %v674
    %v1669 = vunpack.c.l.b16 %v675
    %v1670 = vunpack.c.l.b16 %v676
    %v1671 = vunpack.c.l.b16 %v677
    %v1672 = vunpack.c.l.b16 %v678
    %v1673 = vunpack.c.l.b16 %v679
    %v1674 = vunpack.c.l.b16 %v680
    %v1675 = vunpack.c.l.b16 %v681
    %v1676 = vunpack.c.l.b16 %v682
    %v1677 = vunpack.c.l.b16 %v683
    %v1678 = vunpack.c.l.b16 %v684
    %v1679 = vunpack.c.l.b16 %v685
    %v1680 = vunpack.c.l.b16 %v686
    %v1681 = vunpack.c.l.b16 %v687
    %v1682 = vunpack.c.l.b16 %v688
    %v1683 = vunpack.c.l.b16 %v689
    %v1684 = vunpack.c.l.b16 %v690
    %v1685 = vunpack.c.l.b16 %v691
    %v1686 = vunpack.c.l.b16 %v692
    %v1687 = vunpack.c.l.b16 %v693
    %v1688 = vunpack.c.l.b16 %v694
    %v1689 = vunpack.c.l.b16 %v695
    %v1690 = vunpack.c.l.b16 %v696
    %v1691 = vunpack.c.l.b16 %v697
    %v1692 = vunpack.c.l.b16 %v698
    %v1693 = vunpack.c.l.b16 %v699
    %v1694 = vunpack.c.l.b16 %v700
    %v1695 = vunpack.c.l.b16 %v701
    %v1696 = vunpack.c.l.b16 %v702
    %v1697 = vunpack.c.l.b16 %v703
    %v1698 = vunpack.c.l.b16 %v704
    %v1699 = vunpack.c.l.b16 %v705
    %v1700 = vunpack.c.l.b16 %v706
    %v1701 = vunpack.c.l.b16 %v707
    %v1702 = vunpack.c.l.b16 %v708
    %v1703 = vunpack.c.l.b16 %v709
    %v1704 = vunpack.c.l.b16 %v710
    %v1705 = vunpack.c.l.b16 %v711
    %v1706 = vunpack.c.l.b16 %v712
    %v1707 = vunpack.c.l.b16 %v713
    %v1708 = vunpack.c.l.b16 %v714
    %v1709 = vunpack.c.l.b16 %v715
    %v1710 = vunpack.c.l.b16 %v716
    %v1711 = vunpack.c.l.b16 %v717
    %v1712 = vunpack.c.l.b16 %v718
    %v1713 = vunpack.c.l.b16 %v719
    %v1714 = vunpack.c.l.b16 %v720
    %v1715 = vunpack.c.l.b16 %v721
    %v1716 = vunpack.c.l.b16 %v722
    %v1717 = vunpack.c.l.b16 %v723
    %v1718 = vunpack.c.l.b16 %v724
    %v1719 = vunpack.c.l.b16 %v725
    %v1720 = vunpack.c.l.b16 %v726
    %v1721 = vunpack.c.l.b16 %v727
    %v1722 = vunpack.c.l.b16 %v728
    %v1723 = vunpack.c.l.b16 %v729
    %v1724 = vunpack.c.l.b16 %v730
    %v1725 = vunpack.c.l.b16 %v731
    %v1726 = vunpack.c.l.b16 %v732
    %v1727 = vunpack.c.l.b16 %v733
    %v1728 = vunpack.c.l.b16 %v734
    %v1729 = vunpack.c.l.b16 %v735
    %v1730 = vunpack.c.l.b16 %v736
    %v1731 = vunpack.c.l.b16 %v737
    %v1732 = vunpack.c.l.b16 %v738
    %v1733 = vunpack.c.l.b16 %v739
    %v1734 = vunpack.c.l.b16 %v740
    %v1735 = vunpack.c.l.b16 %v741
    %v1736 = vunpack.c.l.b16 %v742
    %v1737 = vunpack.c.l.b16 %v743
    %v1738 = vunpack.c.l.b16 %v744
    %v1739 = vunpack.c.l.b16 %v745
    %v1740 = vunpack.c.l.b16 %v746
    %v1741 = vunpack.c.l.b16 %v747
    %v1742 = vunpack.c.l.b16 %v748
    %v1743 = vunpack.c.l.b16 %v749
    %v1744 = vunpack.c.l.b16 %v750
    %v1745 = vunpack.c.l.b16 %v751
    %v1746 = vunpack.c.l.b16 %v752
    %v1747 = vunpack.c.l.b16 %v753
    %v1748 = vunpack.c.l.b16 %v754
    %v1749 = vunpack.c.l.b16 %v755
    %v1750 = vunpack.c.l.b16 %v756
    %v1751 = vunpack.c.l.b16 %v757
    %v1752 = vunpack.c.l.b16 %v758
    %v1753 = vunpack.c.l.b16 %v759
    %v1754 = vunpack.c.l.b16 %v760
    %v1755 = vunpack.c.l.b16 %v761
    %v1756 = vunpack.c.l.b16 %v762
    %v1757 = vunpack.c.l.b16 %v763
    %v1758 = vunpack.c.l.b16 %v764
    %v1759 = vunpack.c.l.b16 %v765
    %v1760 = vunpack.c.l.b16 %v766
    %v1761 = vunpack.c.l.b16 %v767
    %v1762 = vunpack.c.l.b16 %v768
    %v1763 = vunpack.c.l.b16 %v769
    %v1764 = vunpack.c.l.b16 %v770
    %v1765 = vunpack.c.l.b16 %v771
    %v1766 = vunpack.c.l.b16 %v772
    %v1767 = vunpack.c.l.b16 %v773
    %v1768 = vunpack.c.l.b16 %v774
    %v1769 = vunpack.c.l.b16 %v775
    %v1770 = vunpack.c.l.b16 %v776
    %v1771 = vunpack.c.l.b16 %v777
    %v1772 = vunpack.c.l.b16 %v778
    %v1773 = vunpack.c.l.b16 %v779
    %v1774 = vunpack.c.l.b16 %v780
    %v1775 = vunpack.c.l.b16 %v781
    %v1776 = vunpack.c.l.b16 %v782
    %v1777 = vunpack.c.l.b16 %v783
    %v1778 = vunpack.c.l.b16 %v784
    %v1779 = vunpack.c.l.b16 %v785
    %v1780 = vunpack.c.l.b16 %v786
    %v1781 = vunpack.c.l.b16 %v787
    %v1782 = vunpack.c.l.b16 %v788
    %v1783 = vunpack.c.l.b16 %v789
    %v1784 = vunpack.c.l.b16 %v790
    %v1785 = vunpack.c.l.b16 %v791
    %v1786 = vunpack.c.l.b16 %v792
    %v1787 = vunpack.c.l.b16 %v793
    %v1788 = vunpack.c.l.b16 %v794
    %v1789 = vunpack.c.l.b16 %v795
    %v1790 = vunpack.c.l.b16 %v796
    %v1791 = vunpack.c.l.b16 %v797
    %v1792 = vunpack.c.l.b16 %v798
    %v1793 = vunpack.c.l.b16 %v799
    %v1794 = vunpack.c.l.b16 %v800
    %v1795 = vunpack.c.l.b16 %v801
    %v1796 = vunpack.c.l.b16 %v802
    %v1797 = vunpack.c.l.b16 %v803
    %v1798 = vunpack.c.l.b16 %v804
    %v1799 = vunpack.c.l.b16 %v805
    %v1800 = vunpack.c.l.b16 %v806
    %v1801 = vunpack.c.l.b16 %v807
    %v1802 = vunpack.c.l.b16 %v808
    %v1803 = vunpack.c.l.b16 %v809
    %v1804 = vunpack.c.l.b16 %v810
    %v1805 = vunpack.c.l.b16 %v811
    %v1806 = vunpack.c.l.b16 %v812
    %v1807 = vunpack.c.l.b16 %v813
    %v1808 = vunpack.c.l.b16 %v814
    %v1809 = vunpack.c.l.b16 %v815
    %v1810 = vunpack.c.l.b16 %v816
    %v1811 = vunpack.c.l.b16 %v817
    %v1812 = vunpack.c.l.b16 %v818
    %v1813 = vunpack.c.l.b16 %v819
    %v1814 = vunpack.c.l.b16 %v820
    %v1815 = vunpack.c.l.b16 %v821
    %v1816 = vunpack.c.l.b16 %v822
    %v1817 = vunpack.c.l.b16 %v823
    %v1818 = vunpack.c.l.b16 %v824
    %v1819 = vunpack.c.l.b16 %v825
    %v1820 = vunpack.c.l.b16 %v826
    %v1821 = vunpack.c.l.b16 %v827
    %v1822 = vunpack.c.l.b16 %v828
    %v1823 = vunpack.c.l.b16 %v829
    %v1824 = vunpack.c.l.b16 %v830
    %v1825 = vunpack.c.l.b16 %v831
    %v1826 = vunpack.c.l.b16 %v832
    %v1827 = vunpack.c.l.b16 %v833
    %v1828 = vunpack.c.l.b16 %v834
    %v1829 = vunpack.c.l.b16 %v835
    %v1830 = vunpack.c.l.b16 %v836
    %v1831 = vunpack.c.l.b16 %v837
    %v1832 = vunpack.c.l.b16 %v838
    %v1833 = vunpack.c.l.b16 %v839
    %v1834 = vunpack.c.l.b16 %v840
    %v1835 = vunpack.c.l.b16 %v841
    %v1836 = vunpack.c.l.b16 %v842
    %v1837 = vunpack.c.l.b16 %v843
    %v1838 = vunpack.c.l.b16 %v844
    %v1839 = vunpack.c.l.b16 %v845
    %v1840 = vunpack.c.l.b16 %v846
    %v1841 = vunpack.c.l.b16 %v847
    %v1842 = vunpack.c.l.b16 %v848
    %v1843 = vunpack.c.l.b16 %v849
    %v1844 = vunpack.c.l.b16 %v850
    %v1845 = vunpack.c.l.b16 %v851
    %v1846 = vunpack.c.l.b16 %v852
    %v1847 = vunpack.c.l.b16 %v853
    %v1848 = vunpack.c.l.b16 %v854
    %v1849 = vunpack.c.l.b16 %v855
    %v1850 = vunpack.c.l.b16 %v856
    %v1851 = vunpack.c.l.b16 %v857
    %v1852 = vunpack.c.l.b16 %v858
    %v1853 = vunpack.c.l.b16 %v859
    %v1854 = vunpack.c.l.b16 %v860
    %v1855 = vunpack.c.l.b16 %v861
    %v1856 = vunpack.c.l.b16 %v862
    %v1857 = vunpack.c.l.b16 %v863
    %v1858 = vunpack.c.l.b16 %v864
    %v1859 = vunpack.c.l.b16 %v865
    %v1860 = vunpack.c.l.b16 %v866
    %v1861 = vunpack.c.l.b16 %v867
    %v1862 = vunpack.c.l.b16 %v868
    %v1863 = vunpack.c.l.b16 %v869
    %v1864 = vunpack.c.l.b16 %v870
    %v1865 = vunpack.c.l.b16 %v871
    %v1866 = vunpack.c.l.b16 %v872
    %v1867 = vunpack.c.l.b16 %v873
    %v1868 = vunpack.c.l.b16 %v874
    %v1869 = vunpack.c.l.b16 %v875
    %v1870 = vunpack.c.l.b16 %v876
    %v1871 = vunpack.c.l.b16 %v877
    %v1872 = vunpack.c.l.b16 %v878
    %v1873 = vunpack.c.l.b16 %v879
    %v1874 = vunpack.c.l.b16 %v880
    %v1875 = vunpack.c.l.b16 %v881
    %v1876 = vunpack.c.l.b16 %v882
    %v1877 = vunpack.c.l.b16 %v883
    %v1878 = vunpack.c.l.b16 %v884
    %v1879 = vunpack.c.l.b16 %v885
    %v1880 = vunpack.c.l.b16 %v886
    %v1881 = vunpack.c.l.b16 %v887
    %v1882 = vunpack.c.l.b16 %v888
    %v1883 = vunpack.c.l.b16 %v889
    %v1884 = vunpack.c.l.b16 %v890
    %v1885 = vunpack.c.l.b16 %v891
    %v1886 = vunpack.c.l.b16 %v892
    %v1887 = vunpack.c.l.b16 %v893
    %v1888 = vunpack.c.l.b16 %v894
    %v1889 = vunpack.c.l.b16 %v895
    %v1890 = vunpack.c.l.b16 %v896
    %v1891 = vunpack.c.l.b16 %v897
    %v1892 = vunpack.c.l.b16 %v898
    %v1893 = vunpack.c.l.b16 %v899
    %v1894 = vunpack.c.l.b16 %v900
    %v1895 = vunpack.c.l.b16 %v901
    %v1896 = vunpack.c.l.b16 %v902
    %v1897 = vunpack.c.l.b16 %v903
    %v1898 = vunpack.c.l.b16 %v904
    %v1899 = vunpack.c.l.b16 %v905
    %v1900 = vunpack.c.l.b16 %v906
    %v1901 = vunpack.c.l.b16 %v907
    %v1902 = vunpack.c.l.b16 %v908
    %v1903 = vunpack.c.l.b16 %v909
    %v1904 = vunpack.c.l.b16 %v910
    %v1905 = vunpack.c.l.b16 %v911
    %v1906 = vunpack.c.l.b16 %v912
    %v1907 = vunpack.c.l.b16 %v913
    %v1908 = vunpack.c.l.b16 %v914
    %v1909 = vunpack.c.l.b16 %v915
    %v1910 = vunpack.c.l.b16 %v916
    %v1911 = vunpack.c.l.b16 %v917
    %v1912 = vunpack.c.l.b16 %v918
    %v1913 = vunpack.c.l.b16 %v919
    %v1914 = vunpack.c.l.b16 %v920
    %v1915 = vunpack.c.l.b16 %v921
    %v1916 = vunpack.c.l.b16 %v922
    %v1917 = vunpack.c.l.b16 %v923
    %v1918 = vunpack.c.l.b16 %v924
    %v1919 = vunpack.c.l.b16 %v925
    %v1920 = vunpack.c.l.b16 %v926
    %v1921 = vunpack.c.l.b16 %v927
    %v1922 = vunpack.c.l.b16 %v928
    %v1923 = vunpack.c.l.b16 %v929
    %v1924 = vunpack.c.l.b16 %v930
    %v1925 = vunpack.c.l.b16 %v931
    %v1926 = vunpack.c.l.b16 %v932
    %v1927 = vunpack.c.l.b16 %v933
    %v1928 = vunpack.c.l.b16 %v934
    %v1929 = vunpack.c.l.b16 %v935
    %v1930 = vunpack.c.l.b16 %v936
    %v1931 = vunpack.c.l.b16 %v937
    %v1932 = vunpack.c.l.b16 %v938
    %v1933 = vunpack.c.l.b16 %v939
    %v1934 = vunpack.c.l.b16 %v940
    %v1935 = vunpack.c.l.b16 %v941
    %v1936 = vunpack.c.l.b16 %v942
    %v1937 = vunpack.c.l.b16 %v943
    %v1938 = vunpack.c.l.b16 %v944
    %v1939 = vunpack.c.l.b16 %v945
    %v1940 = vunpack.c.l.b16 %v946
    %v1941 = vunpack.c.l.b16 %v947
    %v1942 = vunpack.c.l.b16 %v948
    %v1943 = vunpack.c.l.b16 %v949
    %v1944 = vunpack.c.l.b16 %v950
    %v1945 = vunpack.c.l.b16 %v951
    %v1946 = vunpack.c.l.b16 %v952
    %v1947 = vunpack.c.l.b16 %v953
    %v1948 = vunpack.c.l.b16 %v954
    %v1949 = vunpack.c.l.b16 %v955
    %v1950 = vunpack.c.l.b16 %v956
    %v1951 = vunpack.c.l.b16 %v957
    %v1952 = vunpack.c.l.b16 %v958
    %v1953 = vunpack.c.l.b16 %v959
    %v1954 = vunpack.c.l.b16 %v960
    %v1955 = vunpack.c.l.b16 %v961
    %v1956 = vunpack.c.l.b16 %v962
    %v1957 = vunpack.c.l.b16 %v963
    %v1958 = vunpack.c.l.b16 %v964
    %v1959 = vunpack.c.l.b16 %v965
    %v1960 = vunpack.c.l.b16 %v966
    %v1961 = vunpack.c.l.b16 %v967
    %v1962 = vunpack.c.l.b16 %v968
    %v1963 = vunpack.c.l.b16 %v969
    %v1964 = vunpack.c.l.b16 %v970
    %v1965 = vunpack.c.l.b16 %v971
    %v1966 = vunpack.c.l.b16 %v972
    %v1967 = vunpack.c.l.b16 %v973
    %v1968 = vunpack.c.l.b16 %v974
    %v1969 = vunpack.c.l.b16 %v975
    %v1970 = vunpack.c.l.b16 %v976
    %v1971 = vunpack.c.l.b16 %v977
    %v1972 = vunpack.c.l.b16 %v978
    %v1973 = vunpack.c.l.b16 %v979
    %v1974 = vunpack.c.l.b16 %v980
    %v1975 = vunpack.c.l.b16 %v981
    %v1976 = vunpack.c.l.b16 %v982
    %v1977 = vunpack.c.l.b16 %v983
    %v1978 = vunpack.c.l.b16 %v984
    %v1979 = vunpack.c.l.b16 %v985
    %v1980 = vunpack.c.l.b16 %v986
    %v1981 = vunpack.c.l.b16 %v987
    %v1982 = vunpack.c.l.b16 %v988
    %v1983 = vunpack.c.l.b16 %v989
    %v1984 = vunpack.c.l.b16 %v990
    %v1985 = vunpack.c.l.b16 %v991
    %v1986 = vunpack.c.l.b16 %v992
    %v1987 = vunpack.c.l.b16 %v993
    %v1988 = vunpack.c.l.b16 %v994
    %v1989 = vunpack.c.l.b16 %v995
    %v1990 = vunpack.c.l.b16 %v996
    %v1991 = vunpack.c.l.b16 %v997
    %v1992 = vunpack.c.l.b16 %v998
    %v1993 = vunpack.c.l.b16 %v999
    %v1994 = vunpack.c.l.b16 %v1000
    %v1995 = vunpack.c.l.b16 %v1001
    %v1996 = vunpack.c.l.b16 %v1002
    %v1997 = vunpack.c.l.b16 %v1003
    %v1998 = vunpack.c.l.b16 %v1004
    %v1999 = vunpack.c.l.b16 %v1005
    %v2000 = vunpack.c.l.b16 %v1006
    %v2001 = vunpack.c.l.b16 %v1007
    %v2002 = vunpack.c.l.b16 %v1008
    %v2003 = vunpack.c.l.b16 %v1009
    %v2004 = vunpack.c.l.b16 %v1010
    %v2005 = vunpack.c.l.b16 %v1011
    %v2006 = vunpack.c.l.b16 %v1012
    %v2007 = vunpack.c.l.b16 %v1013
    %v2008 = vunpack.c.l.b16 %v1014
    %v2009 = vunpack.c.l.b16 %v1015
    %v2010 = vunpack.c.l.b16 %v1016
    %v2011 = vunpack.c.l.b16 %v1017
    %v2012 = vunpack.c.l.b16 %v1018
    %v2013 = vunpack.c.l.b16 %v1019
    %v2014 = vunpack.c.l.b16 %v1020
    %v2015 = vunpack.c.l.b16 %v1021
    %v2016 = vunpack.c.l.b16 %v1022
    %v2017 = vunpack.c.l.b16 %v1023
    %v2018 = vunpack.c.l.b16 %v1024
    %v2019 = vunpack.c.l.b16 %v1025
    %v2020 = vunpack.c.l.b16 %v1026
    %v2021 = vunpack.c.l.b16 %v1027
    %v2022 = vunpack.c.l.b16 %v1028
    %v2023 = vunpack.c.l.b16 %v1029
    %v2024 = vunpack.c.l.b16 %v1030
    %v2025 = vunpack.c.l.b16 %v1031
    %v2026 = vunpack.c.l.b16 %v1032
    %v2027 = vunpack.c.l.b16 %v1033
    %v2028 = vunpack.c.l.b16 %v1034
    %v2029 = vunpack.c.l.b16 %v1035
    %v2030 = vunpack.c.l.b16 %v1036
    %v2031 = vunpack.c.l.b16 %v1037
    %v2032 = vunpack.c.l.b16 %v1038
    %v2033 = vunpack.c.l.b16 %v1039
    %v2034 = vunpack.c.l.b16 %v1040
    %v2035 = vunpack.c.l.b16 %v1041
    %v2036 = vunpack.c.l.b16 %v1042
    %v2037 = vunpack.c.l.b16 %v1043
    %v2038 = vunpack.c.l.b16 %v1044
    %v2039 = vunpack.c.l.b16 %v1045
    %v2040 = vunpack.c.l.b16 %v1046
    %v2041 = vunpack.c.l.b16 %v1047
    %v2042 = vunpack.c.l.b16 %v1048
    %v2043 = vunpack.c.l.b16 %v1049
    %v2044 = vunpack.c.l.b16 %v1050
    %v2045 = vunpack.c.l.b16 %v1051
    %v2046 = vunpack.c.l.b16 %v1052
    %v2047 = vunpack.c.l.b16 %v1053
    %v2048 = vunpack.c.l.b16 %v1054
    %v2049 = vunpack.c.l.b16 %v1055
    %v2050 = vunpack.c.l.b16 %v1056
    %v2051 = vunpack.c.l.b16 %v1057
    %v2052 = vunpack.c.l.b16 %v1058
    %v2053 = vunpack.c.l.b16 %v1059
    %v2054 = vunpack.c.l.b16 %v1060
    %v2055 = vunpack.c.l.b16 %v1061
    %v2056 = vunpack.c.l.b16 %v1062
    %v2057 = vunpack.c.l.b16 %v1063
    %v2058 = vunpack.c.l.b16 %v1064
    %v2059 = vunpack.c.l.b16 %v1065
    %v2060 = vunpack.c.l.b16 %v1066
    %v2061 = vunpack.c.l.b16 %v1067
    %v2062 = vunpack.c.l.b16 %v1068
    %v2063 = vunpack.c.l.b16 %v1069
    %v2064 = vunpack.c.l.b16 %v1070
    %v2065 = vunpack.c.l.b16 %v1071
    %v2066 = vunpack.c.l.b16 %v1072
    %v2067 = vunpack.c.l.b16 %v1073
    %v2068 = vunpack.c.l.b16 %v1074
    %v2069 = vunpack.c.l.b16 %v1075
    %v2070 = vunpack.c.l.b16 %v1076
    %v2071 = vunpack.c.l.b16 %v1077
    %v2072 = vunpack.c.l.b16 %v1078
    %v2073 = vunpack.c.l.b16 %v1079
    %v2074 = vunpack.c.l.b16 %v1080
    %v2075 = vunpack.c.l.b16 %v1081
    %v2076 = vunpack.c.l.b16 %v1082
    %v2077 = vunpack.c.l.b16 %v1083
    %v2078 = vunpack.c.l.b16 %v1084
    %v2079 = vunpack.c.l.b16 %v1085
    %v2080 = vunpack.c.l.b16 %v1086
    %v2081 = vunpack.c.l.b16 %v1087
    %v2082 = vunpack.c.l.b16 %v1088
    %v2083 = vunpack.c.l.b16 %v1089
    %v2084 = vunpack.c.l.b16 %v1090
    %v2085 = vunpack.c.l.b16 %v1091
    %v2086 = vunpack.c.l.b16 %v1092
    %v2087 = vunpack.c.l.b16 %v1093
    %v2088 = vunpack.c.l.b16 %v1094
    %v2089 = vunpack.c.l.b16 %v1095
    %v2090 = vunpack.c.l.b16 %v1096
    %v2091 = vunpack.c.l.b16 %v1097
    %v2092 = vunpack.c.l.b16 %v1098
    %v2093 = vunpack.c.l.b16 %v1099
    %v2094 = vunpack.c.l.b16 %v1100
    %v2095 = vunpack.c.l.b16 %v1101
    %v2096 = vunpack.c.l.b16 %v1102
    %v2097 = vunpack.c.l.b16 %v1103
    %v2098 = vunpack.c.l.b16 %v1104
    %v2099 = vunpack.c.l.b16 %v1105
    %v2100 = vunpack.c.l.b16 %v1106
    %v2101 = vunpack.c.l.b16 %v1107
    %v2102 = vunpack.c.l.b16 %v1108
    %v2103 = vunpack.c.l.b16 %v1109
    %v2104 = vunpack.c.l.b16 %v1110
    %v2105 = vunpack.c.l.b16 %v1111
    %v2106 = vpack.c.b16 %v1659, %v1658
    %v2107 = vpack.c.b16 %v1661, %v1660
    %v2108 = vpack.c.b16 %v1663, %v1662
    %v2109 = vpack.c.b16 %v1665, %v1664
    %v2110 = vpack.c.b16 %v1667, %v1666
    %v2111 = vpack.c.b16 %v1669, %v1668
    %v2112 = vpack.c.b16 %v1671, %v1670
    %v2113 = vpack.c.b16 %v1673, %v1672
    %v2114 = vpack.c.b16 %v1675, %v1674
    %v2115 = vpack.c.b16 %v1677, %v1676
    %v2116 = vpack.c.b16 %v1679, %v1678
    %v2117 = vpack.c.b16 %v1681, %v1680
    %v2118 = vpack.c.b16 %v1683, %v1682
    %v2119 = vpack.c.b16 %v1685, %v1684
    %v2120 = vpack.c.b16 %v1687, %v1686
    %v2121 = vpack.c.b16 %v1689, %v1688
    %v2122 = vpack.c.b16 %v1691, %v1690
    %v2123 = vpack.c.b16 %v1693, %v1692
    %v2124 = vpack.c.b16 %v1695, %v1694
    %v2125 = vpack.c.b16 %v1697, %v1696
    %v2126 = vpack.c.b16 %v1699, %v1698
    %v2127 = vpack.c.b16 %v1701, %v1700
    %v2128 = vpack.c.b16 %v1703, %v1702
    %v2129 = vpack.c.b16 %v1705, %v1704
    %v2130 = vpack.c.b16 %v1707, %v1706
    %v2131 = vpack.c.b16 %v1709, %v1708
    %v2132 = vpack.c.b16 %v1711, %v1710
    %v2133 = vpack.c.b16 %v1713, %v1712
    %v2134 = vpack.c.b16 %v1715, %v1714
    %v2135 = vpack.c.b16 %v1717, %v1716
    %v2136 = vpack.c.b16 %v1719, %v1718
    %v2137 = vpack.c.b16 %v1721, %v1720
    %v2138 = vpack.c.b16 %v1723, %v1722
    %v2139 = vpack.c.b16 %v1725, %v1724
    %v2140 = vpack.c.b16 %v1727, %v1726
    %v2141 = vpack.c.b16 %v1729, %v1728
    %v2142 = vpack.c.b16 %v1731, %v1730
    %v2143 = vpack.c.b16 %v1733, %v1732
    %v2144 = vpack.c.b16 %v1735, %v1734
    %v2145 = vpack.c.b16 %v1737, %v1736
    %v2146 = vpack.c.b16 %v1739, %v1738
    %v2147 = vpack.c.b16 %v1741, %v1740
    %v2148 = vpack.c.b16 %v1743, %v1742
    %v2149 = vpack.c.b16 %v1745, %v1744
    %v2150 = vpack.c.b16 %v1747, %v1746
    %v2151 = vpack.c.b16 %v1749, %v1748
    %v2152 = vpack.c.b16 %v1751, %v1750
    %v2153 = vpack.c.b16 %v1753, %v1752
    %v2154 = vpack.c.b16 %v1755, %v1754
    %v2155 = vpack.c.b16 %v1757, %v1756
    %v2156 = vpack.c.b16 %v1759, %v1758
    %v2157 = vpack.c.b16 %v1761, %v1760
    %v2158 = vpack.c.b16 %v1763, %v1762
    %v2159 = vpack.c.b16 %v1765, %v1764
    %v2160 = vpack.c.b16 %v1767, %v1766
    %v2161 = vpack.c.b16 %v1769, %v1768
    %v2162 = vpack.c.b16 %v1771, %v1770
    %v2163 = vpack.c.b16 %v1773, %v1772
    %v2164 = vpack.c.b16 %v1775, %v1774
    %v2165 = vpack.c.b16 %v1777, %v1776
    %v2166 = vpack.c.b16 %v1779, %v1778
    %v2167 = vpack.c.b16 %v1781, %v1780
    %v2168 = vpack.c.b16 %v1783, %v1782
    %v2169 = vpack.c.b16 %v1785, %v1784
    %v2170 = vpack.c.b16 %v1787, %v1786
    %v2171 = vpack.c.b16 %v1789, %v1788
    %v2172 = vpack.c.b16 %v1791, %v1790
    %v2173 = vpack.c.b16 %v1793, %v1792
    %v2174 = vpack.c.b16 %v1795, %v1794
    %v2175 = vpack.c.b16 %v1797, %v1796
    %v2176 = vpack.c.b16 %v1799, %v1798
    %v2177 = vpack.c.b16 %v1801, %v1800
    %v2178 = vpack.c.b16 %v1803, %v1802
    %v2179 = vpack.c.b16 %v1805, %v1804
    %v2180 = vpack.c.b16 %v1807, %v1806
    %v2181 = vpack.c.b16 %v1809, %v1808
    %v2182 = vpack.c.b16 %v1811, %v1810
    %v2183 = vpack.c.b16 %v1813, %v1812
    %v2184 = vpack.c.b16 %v1815, %v1814
    %v2185 = vpack.c.b16 %v1817, %v1816
    %v2186 = vpack.c.b16 %v1819, %v1818
    %v2187 = vpack.c.b16 %v1821, %v1820
    %v2188 = vpack.c.b16 %v1823, %v1822
    %v2189 = vpack.c.b16 %v1825, %v1824
    %v2190 = vpack.c.b16 %v1827, %v1826
    %v2191 = vpack.c.b16 %v1829, %v1828
    %v2192 = vpack.c.b16 %v1831, %v1830
    %v2193 = vpack.c.b16 %v1833, %v1832
    %v2194 = vpack.c.b16 %v1835, %v1834
    %v2195 = vpack.c.b16 %v1837, %v1836
    %v2196 = vpack.c.b16 %v1839, %v1838
    %v2197 = vpack.c.b16 %v1841, %v1840
    %v2198 = vpack.c.b16 %v1843, %v1842
    %v2199 = vpack.c.b16 %v1845, %v1844
    %v2200 = vpack.c.b16 %v1847, %v1846
    %v2201 = vpack.c.b16 %v1849, %v1848
    %v2202 = vpack.c.b16 %v1851, %v1850
    %v2203 = vpack.c.b16 %v1853, %v1852
    %v2204 = vpack.c.b16 %v1855, %v1854
    %v2205 = vpack.c.b16 %v1857, %v1856
    %v2206 = vpack.c.b16 %v1859, %v1858
    %v2207 = vpack.c.b16 %v1861, %v1860
    %v2208 = vpack.c.b16 %v1863, %v1862
    %v2209 = vpack.c.b16 %v1865, %v1864
    %v2210 = vpack.c.b16 %v1867, %v1866
    %v2211 = vpack.c.b16 %v1869, %v1868
    %v2212 = vpack.c.b16 %v1871, %v1870
    %v2213 = vpack.c.b16 %v1873, %v1872
    %v2214 = vpack.c.b16 %v1875, %v1874
    %v2215 = vpack.c.b16 %v1877, %v1876
    %v2216 = vpack.c.b16 %v1879, %v1878
    %v2217 = vpack.c.b16 %v1881, %v1880
    %v2218 = vpack.c.b16 %v1883, %v1882
    %v2219 = vpack.c.b16 %v1885, %v1884
    %v2220 = vpack.c.b16 %v1887, %v1886
    %v2221 = vpack.c.b16 %v1889, %v1888
    %v2222 = vpack.c.b16 %v1891, %v1890
    %v2223 = vpack.c.b16 %v1893, %v1892
    %v2224 = vpack.c.b16 %v1895, %v1894
    %v2225 = vpack.c.b16 %v1897, %v1896
    %v2226 = vpack.c.b16 %v1899, %v1898
    %v2227 = vpack.c.b16 %v1901, %v1900
    %v2228 = vpack.c.b16 %v1903, %v1902
    %v2229 = vpack.c.b16 %v1905, %v1904
    %v2230 = vpack.c.b16 %v1907, %v1906
    %v2231 = vpack.c.b16 %v1909, %v1908
    %v2232 = vpack.c.b16 %v1911, %v1910
    %v2233 = vpack.c.b16 %v1913, %v1912
    %v2234 = vpack.c.b16 %v1915, %v1914
    %v2235 = vpack.c.b16 %v1917, %v1916
    %v2236 = vpack.c.b16 %v1919, %v1918
    %v2237 = vpack.c.b16 %v1921, %v1920
    %v2238 = vpack.c.b16 %v1923, %v1922
    %v2239 = vpack.c.b16 %v1925, %v1924
    %v2240 = vpack.c.b16 %v1927, %v1926
    %v2241 = vpack.c.b16 %v1929, %v1928
    %v2242 = vpack.c.b16 %v1931, %v1930
    %v2243 = vpack.c.b16 %v1933, %v1932
    %v2244 = vpack.c.b16 %v1935, %v1934
    %v2245 = vpack.c.b16 %v1937, %v1936
    %v2246 = vpack.c.b16 %v1939, %v1938
    %v2247 = vpack.c.b16 %v1941, %v1940
    %v2248 = vpack.c.b16 %v1943, %v1942
    %v2249 = vpack.c.b16 %v1945, %v1944
    %v2250 = vpack.c.b16 %v1947, %v1946
    %v2251 = vpack.c.b16 %v1949, %v1948
    %v2252 = vpack.c.b16 %v1951, %v1950
    %v2253 = vpack.c.b16 %v1953, %v1952
    %v2254 = vpack.c.b16 %v1955, %v1954
    %v2255 = vpack.c.b16 %v1957, %v1956
    %v2256 = vpack.c.b16 %v1959, %v1958
    %v2257 = vpack.c.b16 %v1961, %v1960
    %v2258 = vpack.c.b16 %v1963, %v1962
    %v2259 = vpack.c.b16 %v1965, %v1964
    %v2260 = vpack.c.b16 %v1967, %v1966
    %v2261 = vpack.c.b16 %v1969, %v1968
    %v2262 = vpack.c.b16 %v1971, %v1970
    %v2263 = vpack.c.b16 %v1973, %v1972
    %v2264 = vpack.c.b16 %v1975, %v1974
    %v2265 = vpack.c.b16 %v1977, %v1976
    %v2266 = vpack.c.b16 %v1979, %v1978
    %v2267 = vpack.c.b16 %v1981, %v1980
    %v2268 = vpack.c.b16 %v1983, %v1982
    %v2269 = vpack.c.b16 %v1985, %v1984
    %v2270 = vpack.c.b16 %v1987, %v1986
    %v2271 = vpack.c.b16 %v1989, %v1988
    %v2272 = vpack.c.b16 %v1991, %v1990
    %v2273 = vpack.c.b16 %v1993, %v1992
    %v2274 = vpack.c.b16 %v1995, %v1994
    %v2275 = vpack.c.b16 %v1997, %v1996
    %v2276 = vpack.c.b16 %v1999, %v1998
    %v2277 = vpack.c.b16 %v2001, %v2000
    %v2278 = vpack.c.b16 %v2003, %v2002
    %v2279 = vpack.c.b16 %v2005, %v2004
    %v2280 = vpack.c.b16 %v2007, %v2006
    %v2281 = vpack.c.b16 %v2009, %v2008
    %v2282 = vpack.c.b16 %v2011, %v2010
    %v2283 = vpack.c.b16 %v2013, %v2012
    %v2284 = vpack.c.b16 %v2015, %v2014
    %v2285 = vpack.c.b16 %v2017, %v2016
    %v2286 = vpack.c.b16 %v2019, %v2018
    %v2287 = vpack.c.b16 %v2021, %v2020
    %v2288 = vpack.c.b16 %v2023, %v2022
    %v2289 = vpack.c.b16 %v2025, %v2024
    %v2290 = vpack.c.b16 %v2027, %v2026
    %v2291 = vpack.c.b16 %v2029, %v2028
    %v2292 = vpack.c.b16 %v2031, %v2030
    %v2293 = vpack.c.b16 %v2033, %v2032
    %v2294 = vpack.c.b16 %v2035, %v2034
    %v2295 = vpack.c.b16 %v2037, %v2036
    %v2296 = vpack.c.b16 %v2039, %v2038
    %v2297 = vpack.c.b16 %v2041, %v2040
    %v2298 = vpack.c.b16 %v2043, %v2042
    %v2299 = vpack.c.b16 %v2045, %v2044
    %v2300 = vpack.c.b16 %v2047, %v2046
    %v2301 = vpack.c.b16 %v2049, %v2048
    %v2302 = vpack.c.b16 %v2051, %v2050
    %v2303 = vpack.c.b16 %v2053, %v2052
    %v2304 = vpack.c.b16 %v2055, %v2054
    %v2305 = vpack.c.b16 %v2057, %v2056
    %v2306 = vpack.c.b16 %v2059, %v2058
    %v2307 = vpack.c.b16 %v2061, %v2060
    %v2308 = vpack.c.b16 %v2063, %v2062
    %v2309 = vpack.c.b16 %v2065, %v2064
    %v2310 = vpack.c.b16 %v2067, %v2066
    %v2311 = vpack.c.b16 %v2069, %v2068
    %v2312 = vpack.c.b16 %v2071, %v2070
    %v2313 = vpack.c.b16 %v2073, %v2072
    %v2314 = vpack.c.b16 %v2075, %v2074
    %v2315 = vpack.c.b16 %v2077, %v2076
    %v2316 = vpack.c.b16 %v2079, %v2078
    %v2317 = vpack.c.b16 %v2081, %v2080
    %v2318 = vpack.c.b16 %v2083, %v2082
    %v2319 = vpack.c.b16 %v2085, %v2084
    %v2320 = vpack.c.b16 %v2087, %v2086
    %v2321 = vpack.c.b16 %v2089, %v2088
    %v2322 = vpack.c.b16 %v2091, %v2090
    %v2323 = vpack.c.b16 %v2093, %v2092
    %v2324 = vpack.c.b16 %v2095, %v2094
    %v2325 = vpack.c.b16 %v2097, %v2096
    %v2326 = vpack.c.b16 %v2099, %v2098
    %v2327 = vpack.c.b16 %v2101, %v2100
    %v2328 = vpack.c.b16 %v2103, %v2102
    %v2329 = vpack.c.b16 %v2105, %v2104
    %2554 = vmatpush.bf16.msra.mxu0 %v2113
    %2555 = vmatpush.bf16.msra.mxu0 %v2112
    %2556 = vmatpush.bf16.msra.mxu0 %v2111
    %2557 = vmatpush.bf16.msra.mxu0 %v2110
    %2558 = vmatpush.bf16.msra.mxu0 %v2109
    %2559 = vmatpush.bf16.msra.mxu0 %v2108
    %2560 = vmatpush.bf16.msra.mxu0 %v2107
    %2561 = vmatpush.bf16.msra.mxu0 %v2106
    %2562 = vmatmul.bf16.gmra.mxu0 %v1154
    %v2563 = vpop.f32.mrf.mxu0
    %v2564 = vadd.f32 0.0, %v2563
    %v2565 = vpop.f32.mrf.mxu0
    %2566 = vdwg.mxu0
    %2567 = vmatpush.bf16.msra.mxu0 %v2121
    %2568 = vmatpush.bf16.msra.mxu0 %v2120
    %2569 = vmatpush.bf16.msra.mxu0 %v2119
    %2570 = vmatpush.bf16.msra.mxu0 %v2118
    %2571 = vmatpush.bf16.msra.mxu0 %v2117
    %2572 = vmatpush.bf16.msra.mxu0 %v2116
    %2573 = vmatpush.bf16.msra.mxu0 %v2115
    %2574 = vmatpush.bf16.msra.mxu0 %v2114
    %2575 = vmatmul.bf16.gmra.mxu0 %v1155
    %v2576 = vpop.f32.mrf.mxu0
    %v2577 = vadd.f32 %v2564, %v2576
    %v2578 = vpop.f32.mrf.mxu0
    %2579 = vdwg.mxu0
    %2580 = vmatpush.bf16.msra.mxu0 %v2129
    %2581 = vmatpush.bf16.msra.mxu0 %v2128
    %2582 = vmatpush.bf16.msra.mxu0 %v2127
    %2583 = vmatpush.bf16.msra.mxu0 %v2126
    %2584 = vmatpush.bf16.msra.mxu0 %v2125
    %2585 = vmatpush.bf16.msra.mxu0 %v2124
    %2586 = vmatpush.bf16.msra.mxu0 %v2123
    %2587 = vmatpush.bf16.msra.mxu0 %v2122
    %2588 = vmatmul.bf16.gmra.mxu0 %v1156
    %v2589 = vpop.f32.mrf.mxu0
    %v2590 = vadd.f32 %v2577, %v2589
    %v2591 = vpop.f32.mrf.mxu0
    %2592 = vdwg.mxu0
    %2593 = vmatpush.bf16.msra.mxu0 %v2137
    %2594 = vmatpush.bf16.msra.mxu0 %v2136
    %2595 = vmatpush.bf16.msra.mxu0 %v2135
    %2596 = vmatpush.bf16.msra.mxu0 %v2134
    %2597 = vmatpush.bf16.msra.mxu0 %v2133
    %2598 = vmatpush.bf16.msra.mxu0 %v2132
    %2599 = vmatpush.bf16.msra.mxu0 %v2131
    %2600 = vmatpush.bf16.msra.mxu0 %v2130
    %2601 = vmatmul.bf16.gmra.mxu0 %v1157
    %v2602 = vpop.f32.mrf.mxu0
    %v2603 = vadd.f32 %v2590, %v2602
    %v2604 = vpop.f32.mrf.mxu0
    %2605 = vdwg.mxu0
    %2606 = vmatpush.bf16.msra.mxu0 %v2145
    %2607 = vmatpush.bf16.msra.mxu0 %v2144
    %2608 = vmatpush.bf16.msra.mxu0 %v2143
    %2609 = vmatpush.bf16.msra.mxu0 %v2142
    %2610 = vmatpush.bf16.msra.mxu0 %v2141
    %2611 = vmatpush.bf16.msra.mxu0 %v2140
    %2612 = vmatpush.bf16.msra.mxu0 %v2139
    %2613 = vmatpush.bf16.msra.mxu0 %v2138
    %2614 = vmatmul.bf16.gmra.mxu0 %v1158
    %v2615 = vpop.f32.mrf.mxu0
    %v2616 = vadd.f32 %v2603, %v2615
    %v2617 = vpop.f32.mrf.mxu0
    %2618 = vdwg.mxu0
    %2619 = vmatpush.bf16.msra.mxu0 %v2153
    %2620 = vmatpush.bf16.msra.mxu0 %v2152
    %2621 = vmatpush.bf16.msra.mxu0 %v2151
    %2622 = vmatpush.bf16.msra.mxu0 %v2150
    %2623 = vmatpush.bf16.msra.mxu0 %v2149
    %2624 = vmatpush.bf16.msra.mxu0 %v2148
    %2625 = vmatpush.bf16.msra.mxu0 %v2147
    %2626 = vmatpush.bf16.msra.mxu0 %v2146
    %2627 = vmatmul.bf16.gmra.mxu0 %v1159
    %v2628 = vpop.f32.mrf.mxu0
    %v2629 = vadd.f32 %v2616, %v2628
    %v2630 = vpop.f32.mrf.mxu0
    %2631 = vdwg.mxu0
    %2632 = vmatpush.bf16.msra.mxu0 %v2161
    %2633 = vmatpush.bf16.msra.mxu0 %v2160
    %2634 = vmatpush.bf16.msra.mxu0 %v2159
    %2635 = vmatpush.bf16.msra.mxu0 %v2158
    %2636 = vmatpush.bf16.msra.mxu0 %v2157
    %2637 = vmatpush.bf16.msra.mxu0 %v2156
    %2638 = vmatpush.bf16.msra.mxu0 %v2155
    %2639 = vmatpush.bf16.msra.mxu0 %v2154
    %2640 = vmatmul.bf16.gmra.mxu0 %v1160
    %v2641 = vpop.f32.mrf.mxu0
    %v2642 = vadd.f32 %v2629, %v2641
    %v2643 = vpop.f32.mrf.mxu0
    %2644 = vdwg.mxu0
    %2645 = vmatpush.bf16.msra.mxu0 %v2169
    %2646 = vmatpush.bf16.msra.mxu0 %v2168
    %2647 = vmatpush.bf16.msra.mxu0 %v2167
    %2648 = vmatpush.bf16.msra.mxu0 %v2166
    %2649 = vmatpush.bf16.msra.mxu0 %v2165
    %2650 = vmatpush.bf16.msra.mxu0 %v2164
    %2651 = vmatpush.bf16.msra.mxu0 %v2163
    %2652 = vmatpush.bf16.msra.mxu0 %v2162
    %2653 = vmatmul.bf16.gmra.mxu0 %v1161
    %v2654 = vpop.f32.mrf.mxu0
    %v2655 = vadd.f32 %v2642, %v2654
    %v2656 = vpop.f32.mrf.mxu0
    %2657 = vdwg.mxu0
    %2658 = vmatpush.bf16.msra.mxu0 %v2177
    %2659 = vmatpush.bf16.msra.mxu0 %v2176
    %2660 = vmatpush.bf16.msra.mxu0 %v2175
    %2661 = vmatpush.bf16.msra.mxu0 %v2174
    %2662 = vmatpush.bf16.msra.mxu0 %v2173
    %2663 = vmatpush.bf16.msra.mxu0 %v2172
    %2664 = vmatpush.bf16.msra.mxu0 %v2171
    %2665 = vmatpush.bf16.msra.mxu0 %v2170
    %2666 = vmatmul.bf16.gmra.mxu0 %v1162
    %v2667 = vpop.f32.mrf.mxu0
    %v2668 = vadd.f32 %v2655, %v2667
    %v2669 = vpop.f32.mrf.mxu0
    %2670 = vdwg.mxu0
    %2671 = vmatpush.bf16.msra.mxu0 %v2185
    %2672 = vmatpush.bf16.msra.mxu0 %v2184
    %2673 = vmatpush.bf16.msra.mxu0 %v2183
    %2674 = vmatpush.bf16.msra.mxu0 %v2182
    %2675 = vmatpush.bf16.msra.mxu0 %v2181
    %2676 = vmatpush.bf16.msra.mxu0 %v2180
    %2677 = vmatpush.bf16.msra.mxu0 %v2179
    %2678 = vmatpush.bf16.msra.mxu0 %v2178
    %2679 = vmatmul.bf16.gmra.mxu0 %v1163
    %v2680 = vpop.f32.mrf.mxu0
    %v2681 = vadd.f32 %v2668, %v2680
    %v2682 = vpop.f32.mrf.mxu0
    %2683 = vdwg.mxu0
    %2684 = vmatpush.bf16.msra.mxu0 %v2193
    %2685 = vmatpush.bf16.msra.mxu0 %v2192
    %2686 = vmatpush.bf16.msra.mxu0 %v2191
    %2687 = vmatpush.bf16.msra.mxu0 %v2190
    %2688 = vmatpush.bf16.msra.mxu0 %v2189
    %2689 = vmatpush.bf16.msra.mxu0 %v2188
    %2690 = vmatpush.bf16.msra.mxu0 %v2187
    %2691 = vmatpush.bf16.msra.mxu0 %v2186
    %2692 = vmatmul.bf16.gmra.mxu0 %v1164
    %v2693 = vpop.f32.mrf.mxu0
    %v2694 = vadd.f32 %v2681, %v2693
    %v2695 = vpop.f32.mrf.mxu0
    %2696 = vdwg.mxu0
    %2697 = vmatpush.bf16.msra.mxu0 %v2201
    %2698 = vmatpush.bf16.msra.mxu0 %v2200
    %2699 = vmatpush.bf16.msra.mxu0 %v2199
    %2700 = vmatpush.bf16.msra.mxu0 %v2198
    %2701 = vmatpush.bf16.msra.mxu0 %v2197
    %2702 = vmatpush.bf16.msra.mxu0 %v2196
    %2703 = vmatpush.bf16.msra.mxu0 %v2195
    %2704 = vmatpush.bf16.msra.mxu0 %v2194
    %2705 = vmatmul.bf16.gmra.mxu0 %v1165
    %v2706 = vpop.f32.mrf.mxu0
    %v2707 = vadd.f32 %v2694, %v2706
    %v2708 = vpop.f32.mrf.mxu0
    %2709 = vdwg.mxu0
    %2710 = vmatpush.bf16.msra.mxu0 %v2209
    %2711 = vmatpush.bf16.msra.mxu0 %v2208
    %2712 = vmatpush.bf16.msra.mxu0 %v2207
    %2713 = vmatpush.bf16.msra.mxu0 %v2206
    %2714 = vmatpush.bf16.msra.mxu0 %v2205
    %2715 = vmatpush.bf16.msra.mxu0 %v2204
    %2716 = vmatpush.bf16.msra.mxu0 %v2203
    %2717 = vmatpush.bf16.msra.mxu0 %v2202
    %2718 = vmatmul.bf16.gmra.mxu0 %v1166
    %v2719 = vpop.f32.mrf.mxu0
    %v2720 = vadd.f32 %v2707, %v2719
    %v2721 = vpop.f32.mrf.mxu0
    %2722 = vdwg.mxu0
    %2723 = vmatpush.bf16.msra.mxu0 %v2217
    %2724 = vmatpush.bf16.msra.mxu0 %v2216
    %2725 = vmatpush.bf16.msra.mxu0 %v2215
    %2726 = vmatpush.bf16.msra.mxu0 %v2214
    %2727 = vmatpush.bf16.msra.mxu0 %v2213
    %2728 = vmatpush.bf16.msra.mxu0 %v2212
    %2729 = vmatpush.bf16.msra.mxu0 %v2211
    %2730 = vmatpush.bf16.msra.mxu0 %v2210
    %2731 = vmatmul.bf16.gmra.mxu0 %v1167
    %v2732 = vpop.f32.mrf.mxu0
    %v2733 = vadd.f32 %v2720, %v2732
    %v2734 = vpop.f32.mrf.mxu0
    %2735 = vdwg.mxu0
    %2736 = vmatpush.bf16.msra.mxu0 %v2225
    %2737 = vmatpush.bf16.msra.mxu0 %v2224
    %2738 = vmatpush.bf16.msra.mxu0 %v2223
    %2739 = vmatpush.bf16.msra.mxu0 %v2222
    %2740 = vmatpush.bf16.msra.mxu0 %v2221
    %2741 = vmatpush.bf16.msra.mxu0 %v2220
    %2742 = vmatpush.bf16.msra.mxu0 %v2219
    %2743 = vmatpush.bf16.msra.mxu0 %v2218
    %2744 = vmatmul.bf16.gmra.mxu0 %v1168
    %v2745 = vpop.f32.mrf.mxu0
    %v2746 = vadd.f32 %v2733, %v2745
    %v2747 = vpop.f32.mrf.mxu0
    %2748 = vdwg.mxu0
    %2749 = vmatpush.bf16.msra.mxu0 %v2233
    %2750 = vmatpush.bf16.msra.mxu0 %v2232
    %2751 = vmatpush.bf16.msra.mxu0 %v2231
    %2752 = vmatpush.bf16.msra.mxu0 %v2230
    %2753 = vmatpush.bf16.msra.mxu0 %v2229
    %2754 = vmatpush.bf16.msra.mxu0 %v2228
    %2755 = vmatpush.bf16.msra.mxu0 %v2227
    %2756 = vmatpush.bf16.msra.mxu0 %v2226
    %2757 = vmatmul.bf16.gmra.mxu0 %v1169
    %v2758 = vpop.f32.mrf.mxu0
    %v2759 = vadd.f32 %v2746, %v2758
    %v2760 = vpop.f32.mrf.mxu0
    %2761 = vdwg.mxu0
    %2762 = vmatpush.bf16.msra.mxu0 %v2241
    %2763 = vmatpush.bf16.msra.mxu0 %v2240
    %2764 = vmatpush.bf16.msra.mxu0 %v2239
    %2765 = vmatpush.bf16.msra.mxu0 %v2238
    %2766 = vmatpush.bf16.msra.mxu0 %v2237
    %2767 = vmatpush.bf16.msra.mxu0 %v2236
    %2768 = vmatpush.bf16.msra.mxu0 %v2235
    %2769 = vmatpush.bf16.msra.mxu0 %v2234
    %2770 = vmatmul.bf16.gmra.mxu0 %v1170
    %v2771 = vpop.f32.mrf.mxu0
    %v2772 = vadd.f32 %v2759, %v2771
    %v2773 = vpop.f32.mrf.mxu0
    %2774 = vdwg.mxu0
    %2775 = vmatpush.bf16.msra.mxu0 %v2249
    %2776 = vmatpush.bf16.msra.mxu0 %v2248
    %2777 = vmatpush.bf16.msra.mxu0 %v2247
    %2778 = vmatpush.bf16.msra.mxu0 %v2246
    %2779 = vmatpush.bf16.msra.mxu0 %v2245
    %2780 = vmatpush.bf16.msra.mxu0 %v2244
    %2781 = vmatpush.bf16.msra.mxu0 %v2243
    %2782 = vmatpush.bf16.msra.mxu0 %v2242
    %2783 = vmatmul.bf16.gmra.mxu0 %v1171
    %v2784 = vpop.f32.mrf.mxu0
    %v2785 = vadd.f32 %v2772, %v2784
    %v2786 = vpop.f32.mrf.mxu0
    %2787 = vdwg.mxu0
    %2788 = vmatpush.bf16.msra.mxu0 %v2257
    %2789 = vmatpush.bf16.msra.mxu0 %v2256
    %2790 = vmatpush.bf16.msra.mxu0 %v2255
    %2791 = vmatpush.bf16.msra.mxu0 %v2254
    %2792 = vmatpush.bf16.msra.mxu0 %v2253
    %2793 = vmatpush.bf16.msra.mxu0 %v2252
    %2794 = vmatpush.bf16.msra.mxu0 %v2251
    %2795 = vmatpush.bf16.msra.mxu0 %v2250
    %2796 = vmatmul.bf16.gmra.mxu0 %v1172
    %v2797 = vpop.f32.mrf.mxu0
    %v2798 = vadd.f32 %v2785, %v2797
    %v2799 = vpop.f32.mrf.mxu0
    %2800 = vdwg.mxu0
    %2801 = vmatpush.bf16.msra.mxu0 %v2265
    %2802 = vmatpush.bf16.msra.mxu0 %v2264
    %2803 = vmatpush.bf16.msra.mxu0 %v2263
    %2804 = vmatpush.bf16.msra.mxu0 %v2262
    %2805 = vmatpush.bf16.msra.mxu0 %v2261
    %2806 = vmatpush.bf16.msra.mxu0 %v2260
    %2807 = vmatpush.bf16.msra.mxu0 %v2259
    %2808 = vmatpush.bf16.msra.mxu0 %v2258
    %2809 = vmatmul.bf16.gmra.mxu0 %v1173
    %v2810 = vpop.f32.mrf.mxu0
    %v2811 = vadd.f32 %v2798, %v2810
    %v2812 = vpop.f32.mrf.mxu0
    %2813 = vdwg.mxu0
    %2814 = vmatpush.bf16.msra.mxu0 %v2273
    %2815 = vmatpush.bf16.msra.mxu0 %v2272
    %2816 = vmatpush.bf16.msra.mxu0 %v2271
    %2817 = vmatpush.bf16.msra.mxu0 %v2270
    %2818 = vmatpush.bf16.msra.mxu0 %v2269
    %2819 = vmatpush.bf16.msra.mxu0 %v2268
    %2820 = vmatpush.bf16.msra.mxu0 %v2267
    %2821 = vmatpush.bf16.msra.mxu0 %v2266
    %2822 = vmatmul.bf16.gmra.mxu0 %v1174
    %v2823 = vpop.f32.mrf.mxu0
    %v2824 = vadd.f32 %v2811, %v2823
    %v2825 = vpop.f32.mrf.mxu0
    %2826 = vdwg.mxu0
    %2827 = vmatpush.bf16.msra.mxu0 %v2281
    %2828 = vmatpush.bf16.msra.mxu0 %v2280
    %2829 = vmatpush.bf16.msra.mxu0 %v2279
    %2830 = vmatpush.bf16.msra.mxu0 %v2278
    %2831 = vmatpush.bf16.msra.mxu0 %v2277
    %2832 = vmatpush.bf16.msra.mxu0 %v2276
    %2833 = vmatpush.bf16.msra.mxu0 %v2275
    %2834 = vmatpush.bf16.msra.mxu0 %v2274
    %2835 = vmatmul.bf16.gmra.mxu0 %v1175
    %v2836 = vpop.f32.mrf.mxu0
    %v2837 = vadd.f32 %v2824, %v2836
    %v2838 = vpop.f32.mrf.mxu0
    %2839 = vdwg.mxu0
    %2840 = vmatpush.bf16.msra.mxu0 %v2289
    %2841 = vmatpush.bf16.msra.mxu0 %v2288
    %2842 = vmatpush.bf16.msra.mxu0 %v2287
    %2843 = vmatpush.bf16.msra.mxu0 %v2286
    %2844 = vmatpush.bf16.msra.mxu0 %v2285
    %2845 = vmatpush.bf16.msra.mxu0 %v2284
    %2846 = vmatpush.bf16.msra.mxu0 %v2283
    %2847 = vmatpush.bf16.msra.mxu0 %v2282
    %2848 = vmatmul.bf16.gmra.mxu0 %v1176
    %v2849 = vpop.f32.mrf.mxu0
    %v2850 = vadd.f32 %v2837, %v2849
    %v2851 = vpop.f32.mrf.mxu0
    %2852 = vdwg.mxu0
    %2853 = vmatpush.bf16.msra.mxu0 %v2297
    %2854 = vmatpush.bf16.msra.mxu0 %v2296
    %2855 = vmatpush.bf16.msra.mxu0 %v2295
    %2856 = vmatpush.bf16.msra.mxu0 %v2294
    %2857 = vmatpush.bf16.msra.mxu0 %v2293
    %2858 = vmatpush.bf16.msra.mxu0 %v2292
    %2859 = vmatpush.bf16.msra.mxu0 %v2291
    %2860 = vmatpush.bf16.msra.mxu0 %v2290
    %2861 = vmatmul.bf16.gmra.mxu0 %v1177
    %v2862 = vpop.f32.mrf.mxu0
    %v2863 = vadd.f32 %v2850, %v2862
    %v2864 = vpop.f32.mrf.mxu0
    %2865 = vdwg.mxu0
    %2866 = vmatpush.bf16.msra.mxu0 %v2305
    %2867 = vmatpush.bf16.msra.mxu0 %v2304
    %2868 = vmatpush.bf16.msra.mxu0 %v2303
    %2869 = vmatpush.bf16.msra.mxu0 %v2302
    %2870 = vmatpush.bf16.msra.mxu0 %v2301
    %2871 = vmatpush.bf16.msra.mxu0 %v2300
    %2872 = vmatpush.bf16.msra.mxu0 %v2299
    %2873 = vmatpush.bf16.msra.mxu0 %v2298
    %2874 = vmatmul.bf16.gmra.mxu0 %v1178
    %v2875 = vpop.f32.mrf.mxu0
    %v2876 = vadd.f32 %v2863, %v2875
    %v2877 = vpop.f32.mrf.mxu0
    %2878 = vdwg.mxu0
    %2879 = vmatpush.bf16.msra.mxu0 %v2313
    %2880 = vmatpush.bf16.msra.mxu0 %v2312
    %2881 = vmatpush.bf16.msra.mxu0 %v2311
    %2882 = vmatpush.bf16.msra.mxu0 %v2310
    %2883 = vmatpush.bf16.msra.mxu0 %v2309
    %2884 = vmatpush.bf16.msra.mxu0 %v2308
    %2885 = vmatpush.bf16.msra.mxu0 %v2307
    %2886 = vmatpush.bf16.msra.mxu0 %v2306
    %2887 = vmatmul.bf16.gmra.mxu0 %v1179
    %v2888 = vpop.f32.mrf.mxu0
    %v2889 = vadd.f32 %v2876, %v2888
    %v2890 = vpop.f32.mrf.mxu0
    %2891 = vdwg.mxu0
    %2892 = vmatpush.bf16.msra.mxu0 %v2321
    %2893 = vmatpush.bf16.msra.mxu0 %v2320
    %2894 = vmatpush.bf16.msra.mxu0 %v2319
    %2895 = vmatpush.bf16.msra.mxu0 %v2318
    %2896 = vmatpush.bf16.msra.mxu0 %v2317
    %2897 = vmatpush.bf16.msra.mxu0 %v2316
    %2898 = vmatpush.bf16.msra.mxu0 %v2315
    %2899 = vmatpush.bf16.msra.mxu0 %v2314
    %2900 = vmatmul.bf16.gmra.mxu0 %v1180
    %v2901 = vpop.f32.mrf.mxu0
    %v2902 = vadd.f32 %v2889, %v2901
    %v2903 = vpop.f32.mrf.mxu0
    %2904 = vdwg.mxu0
    %2905 = vmatpush.bf16.msra.mxu0 %v2329
    %2906 = vmatpush.bf16.msra.mxu0 %v2328
    %2907 = vmatpush.bf16.msra.mxu0 %v2327
    %2908 = vmatpush.bf16.msra.mxu0 %v2326
    %2909 = vmatpush.bf16.msra.mxu0 %v2325
    %2910 = vmatpush.bf16.msra.mxu0 %v2324
    %2911 = vmatpush.bf16.msra.mxu0 %v2323
    %2912 = vmatpush.bf16.msra.mxu0 %v2322
    %2913 = vmatmul.bf16.gmra.mxu0 %v1181
    %v2914 = vpop.f32.mrf.mxu0
    %v2915 = vadd.f32 %v2902, %v2914
    %v2916 = vpop.f32.mrf.mxu0
    %2917 = vdwg.mxu0
    %v2918 = vadd.f32 %v648, %v2915
    %2919 = vst [vmem:[#allocation9] sm:$0xff] %v2918
    // Predicated region
    $region30: #{tpu_custom_call.1} parent=1 // pred_check
      _
    $region31: #{tpu_custom_call.1} parent=1 // pred_check_branch
      %2921 = sbr.rel (0) target = $region33
    $region32: #{tpu_custom_call.1} parent=1 // pred_region
      %2923 = vsyncadd [#allocation5], 0
      %s2925 = sshll.u32 [#allocation9], 4
      %s2926 = int_to_ptr.vmem [resolvable:$true] %s2925
      %s2927 = sshll.u32 %s4, 4
      %s2928 = int_to_ptr.hbm [resolvable:$true] %s2927
      %2930 = dma.vmem_to_hbm [thread:$0]  %s2926, 128, %s2928, [#allocation5]
    $region33: #{tpu_custom_call.1} parent=1 // pred_fallthru
      _
    // Predicated region
    $region34: #{tpu_custom_call.1} parent=1 // pred_check
      _
    $region35: #{tpu_custom_call.1} parent=1 // pred_check_branch
      %2932 = sbr.rel (0) target = $region37
    $region36: #{tpu_custom_call.1} parent=1 // pred_region
      %2934 = dma.done [#allocation5], 128
    $region37: #{tpu_custom_call.1} parent=1 // pred_fallthru
      _
    %2935 = vsyncpa [#allocation4], 1
    %2936 = vsyncpa [#allocation7], 1
    %2937 = vsyncpa [#allocation5], 1

</llo_original>
